<compile_context>
chip_gen: v6e
topology: v6e:2x2x1
jax: 0.10.0
libtpu: 0.0.40
codegen_flags: <defaults>
</compile_context>

<pallas_src>
import functools
import math

import jax
import jax.numpy as jnp
from jax.experimental import pallas as pl
from jax.experimental.pallas import tpu as pltpu


CFG = dict(vocab=128, hidden=32, heads=4, head_dim=8, ffn=64, layers=2)


# ----------------------------- fused kernel --------------------------------

def _encoder_kernel(x_ref, bias_ref, ln1_ref, ln2_ref, wqkv_ref, wo_ref,
                    wgu_ref, wd_ref, fln_ref, o_ref, *, B, S, nh, hd, F):
    """One grid step = one layer, applied to the whole (B*S, H) activation.

    grid = (L,); the activation is carried across the layer axis directly in
    the resident output block `o_ref` (its block index is constant, so it
    stays in VMEM and is written back to HBM once at the end).
    """
    l = pl.program_id(0)
    L = pl.num_programs(0)
    H = nh * hd
    scale = 1.0 / math.sqrt(hd)

    # Initialize the resident activation from the embedding at layer 0.
    @pl.when(l == 0)
    def _():
        o_ref[...] = x_ref[...]

    def rmsnorm(v, w):                      # Gemma-style: scale by (1 + w)
        var = jnp.mean(v * v, axis=-1, keepdims=True)
        return (v * jax.lax.rsqrt(var + 1e-6)) * (1.0 + w)

    x = o_ref[...]                          # (B*S, H) f32, VMEM-resident carry
    bias = bias_ref[...]                    # (B, S)  f32 additive padding bias

    # ---------------- self-attention block ----------------
    h1 = rmsnorm(x, ln1_ref[0])                                  # (B*S, H) f32
    qkv = jnp.dot(h1.astype(jnp.bfloat16), wqkv_ref[0],
                  preferred_element_type=jnp.float32)            # (B*S, 3H) f32

    # Per-head attention, batched over the batch dim (single-batch-dim
    # einsums -> one batched MXU dot per head instead of B tiny 2-D dots).
    # Per-head outputs stay in registers and are concatenated once; no
    # attention scratch, no masked partial stores.
    heads = []
    for hh in range(nh):                                         # static unroll
        c0 = hh * hd
        q = qkv[:, c0:c0 + hd].reshape(B, S, hd)
        k = qkv[:, H + c0:H + c0 + hd].reshape(B, S, hd)
        v = qkv[:, 2 * H + c0:2 * H + c0 + hd].reshape(B, S, hd)
        s = jnp.einsum('bqd,bkd->bqk',
                       q.astype(jnp.bfloat16), k.astype(jnp.bfloat16),
                       preferred_element_type=jnp.float32)       # (B, S, S)
        # NOTE: a fully-padded row softmaxes over uniform -1e9 logits and
        # yields a uniform distribution (matches HF additive-mask behavior).
        s = s * scale + bias[:, None, :]
        s = s - jnp.max(s, axis=-1, keepdims=True)
        p = jnp.exp(s)
        p = p * pl.reciprocal(jnp.sum(p, axis=-1, keepdims=True), approx=True)
        o = jnp.einsum('bqk,bkd->bqd',
                       p.astype(jnp.bfloat16), v.astype(jnp.bfloat16),
                       preferred_element_type=jnp.float32)       # (B, S, hd)
        heads.append(o.reshape(B * S, hd))
    attn = jnp.concatenate(heads, axis=-1)                       # (B*S, H)

    x = x + jnp.dot(attn.astype(jnp.bfloat16), wo_ref[0],
                    preferred_element_type=jnp.float32)          # residual

    # ---------------- GeGLU MLP block ----------------
    h2 = rmsnorm(x, ln2_ref[0])                                  # (B*S, H)
    gu = jnp.dot(h2.astype(jnp.bfloat16), wgu_ref[0],
                 preferred_element_type=jnp.float32)             # (B*S, 2F)
    hmid = jax.nn.gelu(gu[:, :F], approximate=True) * gu[:, F:]
    x = x + jnp.dot(hmid.astype(jnp.bfloat16), wd_ref[0],
                    preferred_element_type=jnp.float32)          # residual

    o_ref[...] = x

    # Final RMSNorm after the last layer (output block then written to HBM).
    @pl.when(l == L - 1)
    def _():
        o_ref[...] = rmsnorm(o_ref[...], fln_ref[...])


# ----------------------------- model (glue) --------------------------------

def init_params(key):
    H, F, V = CFG["hidden"], CFG["ffn"], CFG["vocab"]
    L = CFG["layers"]
    keys = jax.random.split(key, 1 + 7 * L)

    wqkv, wo, wgu, wd = [], [], [], []
    for l in range(L):
        k = keys[1 + 7 * l: 1 + 7 * (l + 1)]
        wq = jax.random.normal(k[0], (H, H), jnp.float32) * 0.02
        wk = jax.random.normal(k[1], (H, H), jnp.float32) * 0.02
        wv = jax.random.normal(k[2], (H, H), jnp.float32) * 0.02
        wqkv.append(jnp.concatenate([wq, wk, wv], axis=1))        # (H, 3H)
        wo.append(jax.random.normal(k[3], (H, H), jnp.float32) * 0.02)
        wg = jax.random.normal(k[4], (H, F), jnp.float32) * 0.02
        wu = jax.random.normal(k[5], (H, F), jnp.float32) * 0.02
        wgu.append(jnp.concatenate([wg, wu], axis=1))             # (H, 2F)
        wd.append(jax.random.normal(k[6], (F, H), jnp.float32) * 0.02)

    return {
        "embed": jax.random.normal(keys[0], (V, H), jnp.float32) * 0.02,
        "ln1": jnp.zeros((L, 1, H), jnp.float32),
        "ln2": jnp.zeros((L, 1, H), jnp.float32),
        "final_ln": jnp.zeros((1, H), jnp.float32),
        # MXU operands stored in bf16 (f32 accumulation inside the kernel).
        "wqkv": jnp.stack(wqkv).astype(jnp.bfloat16),             # (L, H, 3H)
        "wo": jnp.stack(wo).astype(jnp.bfloat16),                 # (L, H, H)
        "wgu": jnp.stack(wgu).astype(jnp.bfloat16),               # (L, H, 2F)
        "wd": jnp.stack(wd).astype(jnp.bfloat16),                 # (L, F, H)
    }


def bert_forward(params, input_ids, attention_mask):
    """Returns the last hidden state, shape (B, S, H), float32."""
    B, S = input_ids.shape
    H, nh, hd, F = CFG["hidden"], CFG["heads"], CFG["head_dim"], CFG["ffn"]
    L = CFG["layers"]

    # Embedding lookup + Gemma input scaling (data-dependent gather: JAX glue).
    x = params["embed"][input_ids] * jnp.float32(math.sqrt(H))    # (B, S, H)
    x = x.reshape(B * S, H)
    # Additive padding bias computed once (hoisted out of the kernel loop).
    bias = (1.0 - attention_mask.astype(jnp.float32)) * jnp.float32(-1e9)

    kern = functools.partial(_encoder_kernel, B=B, S=S, nh=nh, hd=hd, F=F)
    out = pl.pallas_call(
        kern,
        out_shape=jax.ShapeDtypeStruct((B * S, H), jnp.float32),
        grid=(L,),
        in_specs=[
            pl.BlockSpec((B * S, H), lambda l: (0, 0)),            # x (embed)
            pl.BlockSpec((B, S), lambda l: (0, 0)),                # mask bias
            pl.BlockSpec((1, 1, H), lambda l: (l, 0, 0)),          # ln1
            pl.BlockSpec((1, 1, H), lambda l: (l, 0, 0)),          # ln2
            pl.BlockSpec((1, H, 3 * H), lambda l: (l, 0, 0)),      # wqkv
            pl.BlockSpec((1, H, H), lambda l: (l, 0, 0)),          # wo
            pl.BlockSpec((1, H, 2 * F), lambda l: (l, 0, 0)),      # wgu
            pl.BlockSpec((1, F, H), lambda l: (l, 0, 0)),          # wd
            pl.BlockSpec((1, H), lambda l: (0, 0)),                # final_ln
        ],
        # Constant block index across the layer axis -> the output block is
        # the VMEM-resident layer carry; written back to HBM once at the end.
        out_specs=pl.BlockSpec((B * S, H), lambda l: (0, 0)),
        compiler_params=pltpu.CompilerParams(
            dimension_semantics=("arbitrary",)),
    )(x, bias, params["ln1"], params["ln2"], params["wqkv"],
      params["wo"], params["wgu"], params["wd"], params["final_ln"])

    return out.reshape(B, S, H)


if __name__ == "__main__":
    key = jax.random.PRNGKey(0)
    pkey, ikey = jax.random.split(key)

    B, S = 2, 8
    params = init_params(pkey)
    input_ids = jax.random.randint(ikey, (B, S), 0, CFG["vocab"],
                                   dtype=jnp.int32)
    # Batch 1 has two padding tokens at the end.
    attention_mask = jnp.array(
        [[1, 1, 1, 1, 1, 1, 1, 1],
         [1, 1, 1, 1, 1, 1, 0, 0]], dtype=jnp.int32)

    out = bert_forward(params, input_ids, attention_mask)
    out = jax.block_until_ready(out)
    assert out.shape == (B, S, CFG["hidden"])
    assert bool(jnp.all(jnp.isfinite(out)))
    print("KERNEL_OK")
</pallas_src>

<mosaic_0001>
module attributes {stable_mosaic.version = 11 : i64} {
  func.func @_encoder_kernel(%arg0: i32, %arg1: memref<16x32xf32, #tpu.memory_space<vmem>>, %arg2: memref<2x8xf32, #tpu.memory_space<vmem>>, %arg3: memref<1x1x32xf32, #tpu.memory_space<vmem>>, %arg4: memref<1x1x32xf32, #tpu.memory_space<vmem>>, %arg5: memref<1x32x96xbf16, #tpu.memory_space<vmem>>, %arg6: memref<1x32x32xbf16, #tpu.memory_space<vmem>>, %arg7: memref<1x32x128xbf16, #tpu.memory_space<vmem>>, %arg8: memref<1x64x32xbf16, #tpu.memory_space<vmem>>, %arg9: memref<1x32xf32, #tpu.memory_space<vmem>>, %arg10: memref<16x32xf32, #tpu.memory_space<vmem>>) attributes {dimension_semantics = [#tpu.dimension_semantics<arbitrary>], iteration_bounds = array<i64: 2>, scalar_prefetch = 0 : i64, scratch_operands = 0 : i64, tpu.core_type = #tpu.core_type<tc>, window_params = [{pipeline_mode = #tpu.pipeline_mode<synchronous>, transform_indices = @transform_0, window_bounds = array<i64: 16, 32>}, {pipeline_mode = #tpu.pipeline_mode<synchronous>, transform_indices = @transform_1, window_bounds = array<i64: 2, 8>}, {transform_indices = @transform_2, window_bounds = array<i64: 1, 1, 32>}, {transform_indices = @transform_3, window_bounds = array<i64: 1, 1, 32>}, {transform_indices = @transform_4, window_bounds = array<i64: 1, 32, 96>}, {transform_indices = @transform_5, window_bounds = array<i64: 1, 32, 32>}, {transform_indices = @transform_6, window_bounds = array<i64: 1, 32, 128>}, {transform_indices = @transform_7, window_bounds = array<i64: 1, 64, 32>}, {pipeline_mode = #tpu.pipeline_mode<synchronous>, transform_indices = @transform_8, window_bounds = array<i64: 1, 32>}, {pipeline_mode = #tpu.pipeline_mode<synchronous>, transform_indices = @transform_9, window_bounds = array<i64: 16, 32>}]} {
    %c0_i32 = arith.constant 0 : i32
    %0 = arith.cmpi eq, %arg0, %c0_i32 : i32
    %1 = arith.extui %0 : i1 to i32
    %c0_i32_0 = arith.constant 0 : i32
    %2 = arith.cmpi ne, %1, %c0_i32_0 : i32
    scf.if %2 {
      %c0_60 = arith.constant 0 : index
      %c0_61 = arith.constant 0 : index
      %188 = vector.load %arg1[%c0_60, %c0_61] : memref<16x32xf32, #tpu.memory_space<vmem>>, vector<16x32xf32>
      %c0_62 = arith.constant 0 : index
      %c0_63 = arith.constant 0 : index
      %189 = vector.load %arg10[%c0_62, %c0_63] : memref<16x32xf32, #tpu.memory_space<vmem>>, vector<16x32xf32>
      tpu.vector_store %arg10[%c0_62, %c0_63], %188 {strides = array<i32>} : memref<16x32xf32, #tpu.memory_space<vmem>>, vector<16x32xf32>,
    } else {
    }
    %c0 = arith.constant 0 : index
    %c0_1 = arith.constant 0 : index
    %3 = vector.load %arg10[%c0, %c0_1] : memref<16x32xf32, #tpu.memory_space<vmem>>, vector<16x32xf32>
    %c0_2 = arith.constant 0 : index
    %c0_3 = arith.constant 0 : index
    %4 = vector.load %arg2[%c0_2, %c0_3] : memref<2x8xf32, #tpu.memory_space<vmem>>, vector<2x8xf32>
    %c0_4 = arith.constant 0 : index
    %c0_5 = arith.constant 0 : index
    %c0_6 = arith.constant 0 : index
    %5 = vector.load %arg3[%c0_4, %c0_5, %c0_6] : memref<1x1x32xf32, #tpu.memory_space<vmem>>, vector<1x1x32xf32>
    %6 = vector.shape_cast %5 : vector<1x1x32xf32> to vector<1x32xf32>
    %7 = arith.mulf %3, %3 : vector<16x32xf32>
    %cst = arith.constant dense<0.000000e+00> : vector<16xf32>
    %8 = vector.multi_reduction <add>, %7, %cst [1] : vector<16x32xf32> to vector<16xf32>
    %9 = vector.shape_cast %8 : vector<16xf32> to vector<16x1xf32>
    %cst_7 = arith.constant 3.200000e+01 : f32
    %10 = vector.broadcast %cst_7 : f32 to vector<16x1xf32>
    %11 = arith.divf %9, %10 : vector<16x1xf32>
    %cst_8 = arith.constant 9.99999997E-7 : f32
    %12 = vector.broadcast %cst_8 : f32 to vector<16x1xf32>
    %13 = arith.addf %11, %12 : vector<16x1xf32>
    %14 = math.rsqrt %13 : vector<16x1xf32>
    %15 = vector.broadcast %14 : vector<16x1xf32> to vector<16x32xf32>
    %16 = arith.mulf %3, %15 : vector<16x32xf32>
    %cst_9 = arith.constant 1.000000e+00 : f32
    %17 = vector.broadcast %cst_9 : f32 to vector<1x32xf32>
    %18 = arith.addf %17, %6 : vector<1x32xf32>
    %19 = vector.broadcast %18 : vector<1x32xf32> to vector<16x32xf32>
    %20 = arith.mulf %16, %19 : vector<16x32xf32>
    %21 = arith.truncf %20 : vector<16x32xf32> to vector<16x32xbf16>
    %c0_10 = arith.constant 0 : index
    %c0_11 = arith.constant 0 : index
    %c0_12 = arith.constant 0 : index
    %22 = vector.load %arg5[%c0_10, %c0_11, %c0_12] : memref<1x32x96xbf16, #tpu.memory_space<vmem>>, vector<1x32x96xbf16>
    %23 = vector.shape_cast %22 : vector<1x32x96xbf16> to vector<32x96xbf16>
    %cst_13 = arith.constant dense<0.000000e+00> : vector<16x96xf32>
    %24 = tpu.matmul %21, %23, %cst_13 {dimension_numbers = #tpu.dot_dimension_numbers<[1], [0], [0], [1], [0, 0, 1, 1], [], []>} : vector<16x32xbf16>, vector<32x96xbf16>, vector<16x96xf32> -> vector<16x96xf32>
    %25 = vector.extract_strided_slice %24 {offsets = [0, 0], sizes = [16, 8], strides = [1, 1]} : vector<16x96xf32> to vector<16x8xf32>
    %26 = vector.shape_cast %25 : vector<16x8xf32> to vector<2x8x8xf32>
    %27 = vector.extract_strided_slice %24 {offsets = [0, 32], sizes = [16, 8], strides = [1, 1]} : vector<16x96xf32> to vector<16x8xf32>
    %28 = vector.shape_cast %27 : vector<16x8xf32> to vector<2x8x8xf32>
    %29 = vector.extract_strided_slice %24 {offsets = [0, 64], sizes = [16, 8], strides = [1, 1]} : vector<16x96xf32> to vector<16x8xf32>
    %30 = vector.shape_cast %29 : vector<16x8xf32> to vector<2x8x8xf32>
    %31 = arith.truncf %26 : vector<2x8x8xf32> to vector<2x8x8xbf16>
    %32 = arith.truncf %28 : vector<2x8x8xf32> to vector<2x8x8xbf16>
    "tpu.trace_start"() <{level = 10 : i32, message = "bqd,bkd->bqk"}> : () -> ()
    %cst_14 = arith.constant dense<0.000000e+00> : vector<2x8x8xf32>
    %33 = tpu.matmul %31, %32, %cst_14 {dimension_numbers = #tpu.dot_dimension_numbers<[2], [2], [1], [1], [0, 0, 0, 1, 1, 1], [0], [0]>} : vector<2x8x8xbf16>, vector<2x8x8xbf16>, vector<2x8x8xf32> -> vector<2x8x8xf32>
    "tpu.trace_stop"() : () -> ()
    %cst_15 = arith.constant 0.353553385 : f32
    %34 = vector.broadcast %cst_15 : f32 to vector<2x8x8xf32>
    %35 = arith.mulf %33, %34 : vector<2x8x8xf32>
    %36 = vector.shape_cast %4 : vector<2x8xf32> to vector<2x1x8xf32>
    %37 = vector.broadcast %36 : vector<2x1x8xf32> to vector<2x8x8xf32>
    %38 = arith.addf %35, %37 : vector<2x8x8xf32>
    %cst_16 = arith.constant dense<0xFF800000> : vector<2x8xf32>
    %39 = vector.multi_reduction <maximumf>, %38, %cst_16 [2] : vector<2x8x8xf32> to vector<2x8xf32>
    %40 = vector.shape_cast %39 : vector<2x8xf32> to vector<2x8x1xf32>
    %41 = vector.broadcast %40 : vector<2x8x1xf32> to vector<2x8x8xf32>
    %42 = arith.subf %38, %41 : vector<2x8x8xf32>
    %43 = math.exp %42 : vector<2x8x8xf32>
    %cst_17 = arith.constant dense<0.000000e+00> : vector<2x8xf32>
    %44 = vector.multi_reduction <add>, %43, %cst_17 [2] : vector<2x8x8xf32> to vector<2x8xf32>
    %45 = vector.shape_cast %44 : vector<2x8xf32> to vector<2x8x1xf32>
    %46 = tpu.reciprocal %45 {approx = true} : vector<2x8x1xf32> -> vector<2x8x1xf32>
    %47 = vector.broadcast %46 : vector<2x8x1xf32> to vector<2x8x8xf32>
    %48 = arith.mulf %43, %47 : vector<2x8x8xf32>
    %49 = arith.truncf %48 : vector<2x8x8xf32> to vector<2x8x8xbf16>
    %50 = arith.truncf %30 : vector<2x8x8xf32> to vector<2x8x8xbf16>
    "tpu.trace_start"() <{level = 10 : i32, message = "bqk,bkd->bqd"}> : () -> ()
    %cst_18 = arith.constant dense<0.000000e+00> : vector<2x8x8xf32>
    %51 = tpu.matmul %49, %50, %cst_18 {dimension_numbers = #tpu.dot_dimension_numbers<[2], [1], [1], [2], [0, 0, 0, 1, 1, 2], [0], [0]>} : vector<2x8x8xbf16>, vector<2x8x8xbf16>, vector<2x8x8xf32> -> vector<2x8x8xf32>
    "tpu.trace_stop"() : () -> ()
    %52 = vector.shape_cast %51 : vector<2x8x8xf32> to vector<16x8xf32>
    %53 = vector.extract_strided_slice %24 {offsets = [0, 8], sizes = [16, 8], strides = [1, 1]} : vector<16x96xf32> to vector<16x8xf32>
    %54 = vector.shape_cast %53 : vector<16x8xf32> to vector<2x8x8xf32>
    %55 = vector.extract_strided_slice %24 {offsets = [0, 40], sizes = [16, 8], strides = [1, 1]} : vector<16x96xf32> to vector<16x8xf32>
    %56 = vector.shape_cast %55 : vector<16x8xf32> to vector<2x8x8xf32>
    %57 = vector.extract_strided_slice %24 {offsets = [0, 72], sizes = [16, 8], strides = [1, 1]} : vector<16x96xf32> to vector<16x8xf32>
    %58 = vector.shape_cast %57 : vector<16x8xf32> to vector<2x8x8xf32>
    %59 = arith.truncf %54 : vector<2x8x8xf32> to vector<2x8x8xbf16>
    %60 = arith.truncf %56 : vector<2x8x8xf32> to vector<2x8x8xbf16>
    "tpu.trace_start"() <{level = 10 : i32, message = "bqd,bkd->bqk"}> : () -> ()
    %cst_19 = arith.constant dense<0.000000e+00> : vector<2x8x8xf32>
    %61 = tpu.matmul %59, %60, %cst_19 {dimension_numbers = #tpu.dot_dimension_numbers<[2], [2], [1], [1], [0, 0, 0, 1, 1, 1], [0], [0]>} : vector<2x8x8xbf16>, vector<2x8x8xbf16>, vector<2x8x8xf32> -> vector<2x8x8xf32>
    "tpu.trace_stop"() : () -> ()
    %cst_20 = arith.constant 0.353553385 : f32
    %62 = vector.broadcast %cst_20 : f32 to vector<2x8x8xf32>
    %63 = arith.mulf %61, %62 : vector<2x8x8xf32>
    %64 = vector.shape_cast %4 : vector<2x8xf32> to vector<2x1x8xf32>
    %65 = vector.broadcast %64 : vector<2x1x8xf32> to vector<2x8x8xf32>
    %66 = arith.addf %63, %65 : vector<2x8x8xf32>
    %cst_21 = arith.constant dense<0xFF800000> : vector<2x8xf32>
    %67 = vector.multi_reduction <maximumf>, %66, %cst_21 [2] : vector<2x8x8xf32> to vector<2x8xf32>
    %68 = vector.shape_cast %67 : vector<2x8xf32> to vector<2x8x1xf32>
    %69 = vector.broadcast %68 : vector<2x8x1xf32> to vector<2x8x8xf32>
    %70 = arith.subf %66, %69 : vector<2x8x8xf32>
    %71 = math.exp %70 : vector<2x8x8xf32>
    %cst_22 = arith.constant dense<0.000000e+00> : vector<2x8xf32>
    %72 = vector.multi_reduction <add>, %71, %cst_22 [2] : vector<2x8x8xf32> to vector<2x8xf32>
    %73 = vector.shape_cast %72 : vector<2x8xf32> to vector<2x8x1xf32>
    %74 = tpu.reciprocal %73 {approx = true} : vector<2x8x1xf32> -> vector<2x8x1xf32>
    %75 = vector.broadcast %74 : vector<2x8x1xf32> to vector<2x8x8xf32>
    %76 = arith.mulf %71, %75 : vector<2x8x8xf32>
    %77 = arith.truncf %76 : vector<2x8x8xf32> to vector<2x8x8xbf16>
    %78 = arith.truncf %58 : vector<2x8x8xf32> to vector<2x8x8xbf16>
    "tpu.trace_start"() <{level = 10 : i32, message = "bqk,bkd->bqd"}> : () -> ()
    %cst_23 = arith.constant dense<0.000000e+00> : vector<2x8x8xf32>
    %79 = tpu.matmul %77, %78, %cst_23 {dimension_numbers = #tpu.dot_dimension_numbers<[2], [1], [1], [2], [0, 0, 0, 1, 1, 2], [0], [0]>} : vector<2x8x8xbf16>, vector<2x8x8xbf16>, vector<2x8x8xf32> -> vector<2x8x8xf32>
    "tpu.trace_stop"() : () -> ()
    %80 = vector.shape_cast %79 : vector<2x8x8xf32> to vector<16x8xf32>
    %81 = vector.extract_strided_slice %24 {offsets = [0, 16], sizes = [16, 8], strides = [1, 1]} : vector<16x96xf32> to vector<16x8xf32>
    %82 = vector.shape_cast %81 : vector<16x8xf32> to vector<2x8x8xf32>
    %83 = vector.extract_strided_slice %24 {offsets = [0, 48], sizes = [16, 8], strides = [1, 1]} : vector<16x96xf32> to vector<16x8xf32>
    %84 = vector.shape_cast %83 : vector<16x8xf32> to vector<2x8x8xf32>
    %85 = vector.extract_strided_slice %24 {offsets = [0, 80], sizes = [16, 8], strides = [1, 1]} : vector<16x96xf32> to vector<16x8xf32>
    %86 = vector.shape_cast %85 : vector<16x8xf32> to vector<2x8x8xf32>
    %87 = arith.truncf %82 : vector<2x8x8xf32> to vector<2x8x8xbf16>
    %88 = arith.truncf %84 : vector<2x8x8xf32> to vector<2x8x8xbf16>
    "tpu.trace_start"() <{level = 10 : i32, message = "bqd,bkd->bqk"}> : () -> ()
    %cst_24 = arith.constant dense<0.000000e+00> : vector<2x8x8xf32>
    %89 = tpu.matmul %87, %88, %cst_24 {dimension_numbers = #tpu.dot_dimension_numbers<[2], [2], [1], [1], [0, 0, 0, 1, 1, 1], [0], [0]>} : vector<2x8x8xbf16>, vector<2x8x8xbf16>, vector<2x8x8xf32> -> vector<2x8x8xf32>
    "tpu.trace_stop"() : () -> ()
    %cst_25 = arith.constant 0.353553385 : f32
    %90 = vector.broadcast %cst_25 : f32 to vector<2x8x8xf32>
    %91 = arith.mulf %89, %90 : vector<2x8x8xf32>
    %92 = vector.shape_cast %4 : vector<2x8xf32> to vector<2x1x8xf32>
    %93 = vector.broadcast %92 : vector<2x1x8xf32> to vector<2x8x8xf32>
    %94 = arith.addf %91, %93 : vector<2x8x8xf32>
    %cst_26 = arith.constant dense<0xFF800000> : vector<2x8xf32>
    %95 = vector.multi_reduction <maximumf>, %94, %cst_26 [2] : vector<2x8x8xf32> to vector<2x8xf32>
    %96 = vector.shape_cast %95 : vector<2x8xf32> to vector<2x8x1xf32>
    %97 = vector.broadcast %96 : vector<2x8x1xf32> to vector<2x8x8xf32>
    %98 = arith.subf %94, %97 : vector<2x8x8xf32>
    %99 = math.exp %98 : vector<2x8x8xf32>
    %cst_27 = arith.constant dense<0.000000e+00> : vector<2x8xf32>
    %100 = vector.multi_reduction <add>, %99, %cst_27 [2] : vector<2x8x8xf32> to vector<2x8xf32>
    %101 = vector.shape_cast %100 : vector<2x8xf32> to vector<2x8x1xf32>
    %102 = tpu.reciprocal %101 {approx = true} : vector<2x8x1xf32> -> vector<2x8x1xf32>
    %103 = vector.broadcast %102 : vector<2x8x1xf32> to vector<2x8x8xf32>
    %104 = arith.mulf %99, %103 : vector<2x8x8xf32>
    %105 = arith.truncf %104 : vector<2x8x8xf32> to vector<2x8x8xbf16>
    %106 = arith.truncf %86 : vector<2x8x8xf32> to vector<2x8x8xbf16>
    "tpu.trace_start"() <{level = 10 : i32, message = "bqk,bkd->bqd"}> : () -> ()
    %cst_28 = arith.constant dense<0.000000e+00> : vector<2x8x8xf32>
    %107 = tpu.matmul %105, %106, %cst_28 {dimension_numbers = #tpu.dot_dimension_numbers<[2], [1], [1], [2], [0, 0, 0, 1, 1, 2], [0], [0]>} : vector<2x8x8xbf16>, vector<2x8x8xbf16>, vector<2x8x8xf32> -> vector<2x8x8xf32>
    "tpu.trace_stop"() : () -> ()
    %108 = vector.shape_cast %107 : vector<2x8x8xf32> to vector<16x8xf32>
    %109 = vector.extract_strided_slice %24 {offsets = [0, 24], sizes = [16, 8], strides = [1, 1]} : vector<16x96xf32> to vector<16x8xf32>
    %110 = vector.shape_cast %109 : vector<16x8xf32> to vector<2x8x8xf32>
    %111 = vector.extract_strided_slice %24 {offsets = [0, 56], sizes = [16, 8], strides = [1, 1]} : vector<16x96xf32> to vector<16x8xf32>
    %112 = vector.shape_cast %111 : vector<16x8xf32> to vector<2x8x8xf32>
    %113 = vector.extract_strided_slice %24 {offsets = [0, 88], sizes = [16, 8], strides = [1, 1]} : vector<16x96xf32> to vector<16x8xf32>
    %114 = vector.shape_cast %113 : vector<16x8xf32> to vector<2x8x8xf32>
    %115 = arith.truncf %110 : vector<2x8x8xf32> to vector<2x8x8xbf16>
    %116 = arith.truncf %112 : vector<2x8x8xf32> to vector<2x8x8xbf16>
    "tpu.trace_start"() <{level = 10 : i32, message = "bqd,bkd->bqk"}> : () -> ()
    %cst_29 = arith.constant dense<0.000000e+00> : vector<2x8x8xf32>
    %117 = tpu.matmul %115, %116, %cst_29 {dimension_numbers = #tpu.dot_dimension_numbers<[2], [2], [1], [1], [0, 0, 0, 1, 1, 1], [0], [0]>} : vector<2x8x8xbf16>, vector<2x8x8xbf16>, vector<2x8x8xf32> -> vector<2x8x8xf32>
    "tpu.trace_stop"() : () -> ()
    %cst_30 = arith.constant 0.353553385 : f32
    %118 = vector.broadcast %cst_30 : f32 to vector<2x8x8xf32>
    %119 = arith.mulf %117, %118 : vector<2x8x8xf32>
    %120 = vector.shape_cast %4 : vector<2x8xf32> to vector<2x1x8xf32>
    %121 = vector.broadcast %120 : vector<2x1x8xf32> to vector<2x8x8xf32>
    %122 = arith.addf %119, %121 : vector<2x8x8xf32>
    %cst_31 = arith.constant dense<0xFF800000> : vector<2x8xf32>
    %123 = vector.multi_reduction <maximumf>, %122, %cst_31 [2] : vector<2x8x8xf32> to vector<2x8xf32>
    %124 = vector.shape_cast %123 : vector<2x8xf32> to vector<2x8x1xf32>
    %125 = vector.broadcast %124 : vector<2x8x1xf32> to vector<2x8x8xf32>
    %126 = arith.subf %122, %125 : vector<2x8x8xf32>
    %127 = math.exp %126 : vector<2x8x8xf32>
    %cst_32 = arith.constant dense<0.000000e+00> : vector<2x8xf32>
    %128 = vector.multi_reduction <add>, %127, %cst_32 [2] : vector<2x8x8xf32> to vector<2x8xf32>
    %129 = vector.shape_cast %128 : vector<2x8xf32> to vector<2x8x1xf32>
    %130 = tpu.reciprocal %129 {approx = true} : vector<2x8x1xf32> -> vector<2x8x1xf32>
    %131 = vector.broadcast %130 : vector<2x8x1xf32> to vector<2x8x8xf32>
    %132 = arith.mulf %127, %131 : vector<2x8x8xf32>
    %133 = arith.truncf %132 : vector<2x8x8xf32> to vector<2x8x8xbf16>
    %134 = arith.truncf %114 : vector<2x8x8xf32> to vector<2x8x8xbf16>
    "tpu.trace_start"() <{level = 10 : i32, message = "bqk,bkd->bqd"}> : () -> ()
    %cst_33 = arith.constant dense<0.000000e+00> : vector<2x8x8xf32>
    %135 = tpu.matmul %133, %134, %cst_33 {dimension_numbers = #tpu.dot_dimension_numbers<[2], [1], [1], [2], [0, 0, 0, 1, 1, 2], [0], [0]>} : vector<2x8x8xbf16>, vector<2x8x8xbf16>, vector<2x8x8xf32> -> vector<2x8x8xf32>
    "tpu.trace_stop"() : () -> ()
    %136 = vector.shape_cast %135 : vector<2x8x8xf32> to vector<16x8xf32>
    %137 = tpu.concatenate %52, %80, %108, %136 in 1 : vector<16x8xf32>, vector<16x8xf32>, vector<16x8xf32>, vector<16x8xf32> -> vector<16x32xf32>
    %138 = arith.truncf %137 : vector<16x32xf32> to vector<16x32xbf16>
    %c0_34 = arith.constant 0 : index
    %c0_35 = arith.constant 0 : index
    %c0_36 = arith.constant 0 : index
    %139 = vector.load %arg6[%c0_34, %c0_35, %c0_36] : memref<1x32x32xbf16, #tpu.memory_space<vmem>>, vector<1x32x32xbf16>
    %140 = vector.shape_cast %139 : vector<1x32x32xbf16> to vector<32x32xbf16>
    %cst_37 = arith.constant dense<0.000000e+00> : vector<16x32xf32>
    %141 = tpu.matmul %138, %140, %cst_37 {dimension_numbers = #tpu.dot_dimension_numbers<[1], [0], [0], [1], [0, 0, 1, 1], [], []>} : vector<16x32xbf16>, vector<32x32xbf16>, vector<16x32xf32> -> vector<16x32xf32>
    %142 = arith.addf %3, %141 : vector<16x32xf32>
    %c0_38 = arith.constant 0 : index
    %c0_39 = arith.constant 0 : index
    %c0_40 = arith.constant 0 : index
    %143 = vector.load %arg4[%c0_38, %c0_39, %c0_40] : memref<1x1x32xf32, #tpu.memory_space<vmem>>, vector<1x1x32xf32>
    %144 = vector.shape_cast %143 : vector<1x1x32xf32> to vector<1x32xf32>
    %145 = arith.mulf %142, %142 : vector<16x32xf32>
    %cst_41 = arith.constant dense<0.000000e+00> : vector<16xf32>
    %146 = vector.multi_reduction <add>, %145, %cst_41 [1] : vector<16x32xf32> to vector<16xf32>
    %147 = vector.shape_cast %146 : vector<16xf32> to vector<16x1xf32>
    %cst_42 = arith.constant 3.200000e+01 : f32
    %148 = vector.broadcast %cst_42 : f32 to vector<16x1xf32>
    %149 = arith.divf %147, %148 : vector<16x1xf32>
    %cst_43 = arith.constant 9.99999997E-7 : f32
    %150 = vector.broadcast %cst_43 : f32 to vector<16x1xf32>
    %151 = arith.addf %149, %150 : vector<16x1xf32>
    %152 = math.rsqrt %151 : vector<16x1xf32>
    %153 = vector.broadcast %152 : vector<16x1xf32> to vector<16x32xf32>
    %154 = arith.mulf %142, %153 : vector<16x32xf32>
    %cst_44 = arith.constant 1.000000e+00 : f32
    %155 = vector.broadcast %cst_44 : f32 to vector<1x32xf32>
    %156 = arith.addf %155, %144 : vector<1x32xf32>
    %157 = vector.broadcast %156 : vector<1x32xf32> to vector<16x32xf32>
    %158 = arith.mulf %154, %157 : vector<16x32xf32>
    %159 = arith.truncf %158 : vector<16x32xf32> to vector<16x32xbf16>
    %c0_45 = arith.constant 0 : index
    %c0_46 = arith.constant 0 : index
    %c0_47 = arith.constant 0 : index
    %160 = vector.load %arg7[%c0_45, %c0_46, %c0_47] : memref<1x32x128xbf16, #tpu.memory_space<vmem>>, vector<1x32x128xbf16>
    %161 = vector.shape_cast %160 : vector<1x32x128xbf16> to vector<32x128xbf16>
    %cst_48 = arith.constant dense<0.000000e+00> : vector<16x128xf32>
    %162 = tpu.matmul %159, %161, %cst_48 {dimension_numbers = #tpu.dot_dimension_numbers<[1], [0], [0], [1], [0, 0, 1, 1], [], []>} : vector<16x32xbf16>, vector<32x128xbf16>, vector<16x128xf32> -> vector<16x128xf32>
    %163 = vector.extract_strided_slice %162 {offsets = [0, 0], sizes = [16, 64], strides = [1, 1]} : vector<16x128xf32> to vector<16x64xf32>
    %164 = arith.mulf %163, %163 : vector<16x64xf32>
    %165 = arith.mulf %163, %164 : vector<16x64xf32>
    %cst_49 = arith.constant 4.471500e-02 : f32
    %166 = vector.broadcast %cst_49 : f32 to vector<16x64xf32>
    %167 = arith.mulf %166, %165 : vector<16x64xf32>
    %168 = arith.addf %163, %167 : vector<16x64xf32>
    %cst_50 = arith.constant 0.797884583 : f32
    %169 = vector.broadcast %cst_50 : f32 to vector<16x64xf32>
    %170 = arith.mulf %169, %168 : vector<16x64xf32>
    %171 = math.tanh %170 : vector<16x64xf32>
    %cst_51 = arith.constant 1.000000e+00 : f32
    %172 = vector.broadcast %cst_51 : f32 to vector<16x64xf32>
    %173 = arith.addf %172, %171 : vector<16x64xf32>
    %cst_52 = arith.constant 5.000000e-01 : f32
    %174 = vector.broadcast %cst_52 : f32 to vector<16x64xf32>
    %175 = arith.mulf %174, %173 : vector<16x64xf32>
    %176 = arith.mulf %163, %175 : vector<16x64xf32>
    %177 = vector.extract_strided_slice %162 {offsets = [0, 64], sizes = [16, 64], strides = [1, 1]} : vector<16x128xf32> to vector<16x64xf32>
    %178 = arith.mulf %176, %177 : vector<16x64xf32>
    %179 = arith.truncf %178 : vector<16x64xf32> to vector<16x64xbf16>
    %c0_53 = arith.constant 0 : index
    %c0_54 = arith.constant 0 : index
    %c0_55 = arith.constant 0 : index
    %180 = vector.load %arg8[%c0_53, %c0_54, %c0_55] : memref<1x64x32xbf16, #tpu.memory_space<vmem>>, vector<1x64x32xbf16>
    %181 = vector.shape_cast %180 : vector<1x64x32xbf16> to vector<64x32xbf16>
    %cst_56 = arith.constant dense<0.000000e+00> : vector<16x32xf32>
    %182 = tpu.matmul %179, %181, %cst_56 {dimension_numbers = #tpu.dot_dimension_numbers<[1], [0], [0], [1], [0, 0, 1, 1], [], []>} : vector<16x64xbf16>, vector<64x32xbf16>, vector<16x32xf32> -> vector<16x32xf32>
    %183 = arith.addf %142, %182 : vector<16x32xf32>
    %c0_57 = arith.constant 0 : index
    %c0_58 = arith.constant 0 : index
    %184 = vector.load %arg10[%c0_57, %c0_58] : memref<16x32xf32, #tpu.memory_space<vmem>>, vector<16x32xf32>
    tpu.vector_store %arg10[%c0_57, %c0_58], %183 {strides = array<i32>} : memref<16x32xf32, #tpu.memory_space<vmem>>, vector<16x32xf32>,
    %c1_i32 = arith.constant 1 : i32
    %185 = arith.cmpi eq, %arg0, %c1_i32 : i32
    %186 = arith.extui %185 : i1 to i32
    %c0_i32_59 = arith.constant 0 : i32
    %187 = arith.cmpi ne, %186, %c0_i32_59 : i32
    scf.if %187 {
      %c0_60 = arith.constant 0 : index
      %c0_61 = arith.constant 0 : index
      %188 = vector.load %arg10[%c0_60, %c0_61] : memref<16x32xf32, #tpu.memory_space<vmem>>, vector<16x32xf32>
      %c0_62 = arith.constant 0 : index
      %c0_63 = arith.constant 0 : index
      %189 = vector.load %arg9[%c0_62, %c0_63] : memref<1x32xf32, #tpu.memory_space<vmem>>, vector<1x32xf32>
      %190 = arith.mulf %188, %188 : vector<16x32xf32>
      %cst_64 = arith.constant dense<0.000000e+00> : vector<16xf32>
      %191 = vector.multi_reduction <add>, %190, %cst_64 [1] : vector<16x32xf32> to vector<16xf32>
      %192 = vector.shape_cast %191 : vector<16xf32> to vector<16x1xf32>
      %cst_65 = arith.constant 3.200000e+01 : f32
      %193 = vector.broadcast %cst_65 : f32 to vector<16x1xf32>
      %194 = arith.divf %192, %193 : vector<16x1xf32>
      %cst_66 = arith.constant 9.99999997E-7 : f32
      %195 = vector.broadcast %cst_66 : f32 to vector<16x1xf32>
      %196 = arith.addf %194, %195 : vector<16x1xf32>
      %197 = math.rsqrt %196 : vector<16x1xf32>
      %198 = vector.broadcast %197 : vector<16x1xf32> to vector<16x32xf32>
      %199 = arith.mulf %188, %198 : vector<16x32xf32>
      %cst_67 = arith.constant 1.000000e+00 : f32
      %200 = vector.broadcast %cst_67 : f32 to vector<1x32xf32>
      %201 = arith.addf %200, %189 : vector<1x32xf32>
      %202 = vector.broadcast %201 : vector<1x32xf32> to vector<16x32xf32>
      %203 = arith.mulf %199, %202 : vector<16x32xf32>
      %c0_68 = arith.constant 0 : index
      %c0_69 = arith.constant 0 : index
      %204 = vector.load %arg10[%c0_68, %c0_69] : memref<16x32xf32, #tpu.memory_space<vmem>>, vector<16x32xf32>
      tpu.vector_store %arg10[%c0_68, %c0_69], %203 {strides = array<i32>} : memref<16x32xf32, #tpu.memory_space<vmem>>, vector<16x32xf32>,
    } else {
    }
    return
  }
  func.func @transform_0(%arg0: i32) -> (i32, i32) {
    %c0_i32 = arith.constant 0 : i32
    %c0_i32_0 = arith.constant 0 : i32
    %c0_i32_1 = arith.constant 0 : i32
    return %c0_i32, %c0_i32_0 : i32, i32
  }
  func.func @transform_1(%arg0: i32) -> (i32, i32) {
    %c0_i32 = arith.constant 0 : i32
    %c0_i32_0 = arith.constant 0 : i32
    %c0_i32_1 = arith.constant 0 : i32
    return %c0_i32, %c0_i32_0 : i32, i32
  }
  func.func @transform_2(%arg0: i32) -> (i32, i32, i32) {
    %c0_i32 = arith.constant 0 : i32
    %c0_i32_0 = arith.constant 0 : i32
    %c0_i32_1 = arith.constant 0 : i32
    return %arg0, %c0_i32, %c0_i32_0 : i32, i32, i32
  }
  func.func @transform_3(%arg0: i32) -> (i32, i32, i32) {
    %c0_i32 = arith.constant 0 : i32
    %c0_i32_0 = arith.constant 0 : i32
    %c0_i32_1 = arith.constant 0 : i32
    return %arg0, %c0_i32, %c0_i32_0 : i32, i32, i32
  }
  func.func @transform_4(%arg0: i32) -> (i32, i32, i32) {
    %c0_i32 = arith.constant 0 : i32
    %c0_i32_0 = arith.constant 0 : i32
    %c0_i32_1 = arith.constant 0 : i32
    return %arg0, %c0_i32, %c0_i32_0 : i32, i32, i32
  }
  func.func @transform_5(%arg0: i32) -> (i32, i32, i32) {
    %c0_i32 = arith.constant 0 : i32
    %c0_i32_0 = arith.constant 0 : i32
    %c0_i32_1 = arith.constant 0 : i32
    return %arg0, %c0_i32, %c0_i32_0 : i32, i32, i32
  }
  func.func @transform_6(%arg0: i32) -> (i32, i32, i32) {
    %c0_i32 = arith.constant 0 : i32
    %c0_i32_0 = arith.constant 0 : i32
    %c0_i32_1 = arith.constant 0 : i32
    return %arg0, %c0_i32, %c0_i32_0 : i32, i32, i32
  }
  func.func @transform_7(%arg0: i32) -> (i32, i32, i32) {
    %c0_i32 = arith.constant 0 : i32
    %c0_i32_0 = arith.constant 0 : i32
    %c0_i32_1 = arith.constant 0 : i32
    return %arg0, %c0_i32, %c0_i32_0 : i32, i32, i32
  }
  func.func @transform_8(%arg0: i32) -> (i32, i32) {
    %c0_i32 = arith.constant 0 : i32
    %c0_i32_0 = arith.constant 0 : i32
    %c0_i32_1 = arith.constant 0 : i32
    return %c0_i32, %c0_i32_0 : i32, i32
  }
  func.func @transform_9(%arg0: i32) -> (i32, i32) {
    %c0_i32 = arith.constant 0 : i32
    %c0_i32_0 = arith.constant 0 : i32
    %c0_i32_1 = arith.constant 0 : i32
    return %c0_i32, %c0_i32_0 : i32, i32
  }
}

</mosaic_0001>

<llo_original>
// kernel: tpu_custom_call.1
$region0: #{tpu_custom_call.1}
  #allocation0 [shape = 'u32[]', space=smem, size = 0x4, offset = 0x4, fixed_abs, tag = 'smem constant byte address 0x4 - core index']
  #allocation1 [shape = 'u32[144,128]{1,0:T(1,128)}', space=vmem, size = 0x12000, scoped, tag = 'internal scratch']
  %s0 = inlined_call_operand.hbm [shape: f32[16,32], index: 0, kind: input, shape index: {}]
  %s1 = inlined_call_operand.hbm [shape: f32[2,8], index: 1, kind: input, shape index: {}]
  %s2 = inlined_call_operand.vmem [shape: f32[2,1,32], index: 2, kind: input, shape index: {}]
  %s3 = inlined_call_operand.vmem [shape: f32[2,1,32], index: 3, kind: input, shape index: {}]
  %s4 = inlined_call_operand.vmem [shape: bf16[2,32,96], index: 4, kind: input, shape index: {}]
  %s5 = inlined_call_operand.vmem [shape: bf16[2,32,32], index: 5, kind: input, shape index: {}]
  %s6 = inlined_call_operand.vmem [shape: bf16[2,32,128], index: 6, kind: input, shape index: {}]
  %s7 = inlined_call_operand.vmem [shape: bf16[2,64,32], index: 7, kind: input, shape index: {}]
  %s8 = inlined_call_operand.vmem [shape: f32[1,32], index: 8, kind: input, shape index: {}]
  %s9 = inlined_call_operand.hbm [shape: f32[16,32], index: 9, kind: output, shape index: {}]
  %s10 = sld [smem:[#allocation0]]
  $region85: #{tpu_custom_call.1} parent=0
    _
  %s12 = ssub.s32 1, %s10
  %s13 = scalar_select 0, %s12, %s10
  $region1: #{tpu_custom_call.1} parent=0
    #allocation2 [shape = 'u8[8192]{0}', space=vmem, size = 0x2000, scoped, tag = 'input window, operand 0, single buffered']
    #allocation3 [shape = 's32[2]{0}', space=sflag, size = 0x8, scoped, tag = 'scoped memory for tpu_custom_call.1']
    #allocation4 [shape = 's32[2]{0}', space=sflag, size = 0x8, scoped, tag = 'scoped memory for tpu_custom_call.1']
    #allocation5 [shape = 'u8[1024]{0}', space=vmem, size = 0x400, scoped, tag = 'input window, operand 1, single buffered']
    #allocation6 [shape = 's32[1]{0}', space=sflag, size = 0x4, scoped, tag = 'scoped memory for tpu_custom_call.1']
    #allocation7 [shape = 'u8[8192]{0}', space=vmem, size = 0x2000, scoped, tag = 'output window, operand 0, single buffered']
    %14 = vsyncpa [#allocation3], 0
    %15 = vsyncpa [#allocation6], 0
    %16 = vsyncpa [#allocation4], 0
    loop: start=0, step=1, limit=4
    $region2: #{tpu_custom_call.1} parent=1 // loop_pre_header
      _
    $region3: #{tpu_custom_call.1} parent=1 // loop_header
      %s18 = sphi 0, %s22
      %p19 = scmp.ge.s32.totalorder %s18, 4
      %s26 = sphi 0, %s26
      %s28 = sphi 0, %s26
      %s29 = sphi 0, %s28
      %s43 = sphi 0, %s29
      %s47 = sphi 0, %s47
      %s49 = sphi 0, %s47
      %s50 = sphi 0, %s49
      %s64 = sphi 0, %s50
      %s70 = sphi 0, %s72
      %s73 = sphi 0, %s70
      %s74 = sphi 0, %s73
      %s90 = sphi 0, %s74
      %s96 = sphi 0, %s98
      %s99 = sphi 0, %s96
      %s100 = sphi 0, %s99
      %s116 = sphi 0, %s100
      %s122 = sphi 0, %s124
      %s125 = sphi 0, %s122
      %s126 = sphi 0, %s125
      %s142 = sphi 0, %s126
      %s148 = sphi 0, %s150
      %s151 = sphi 0, %s148
      %s152 = sphi 0, %s151
      %s168 = sphi 0, %s152
      %s174 = sphi 0, %s176
      %s177 = sphi 0, %s174
      %s178 = sphi 0, %s177
      %s194 = sphi 0, %s178
      %s200 = sphi 0, %s202
      %s203 = sphi 0, %s200
      %s204 = sphi 0, %s203
      %s220 = sphi 0, %s204
      %s224 = sphi 0, %s224
      %s226 = sphi 0, %s224
      %s227 = sphi 0, %s226
      %s241 = sphi 0, %s227
      %s245 = sphi 0, %s245
      %s247 = sphi 0, %s245
      %s248 = sphi 0, %s247
      %s262 = sphi 0, %s248
    $region4: #{tpu_custom_call.1} parent=1 // loop_header_branch
      %21 = sbr.rel (%p19) target = $region8
    $region5: #{tpu_custom_call.1} parent=1 // loop_body
      %s23 = ssub.s32 %s18, 1
      %s24 = ssub.s32 %s18, 2
      %s25 = sadd.s32 %s18, 1
      %s27 = sadd.s32 %s26, 1
      %p30 = scmp.eq.s32.totalorder %s18, 1
      %p31 = scmp.ne.s32.totalorder %s26, %s28
      %p32 = scmp.eq.s32.totalorder %s18, 0
      %p33 = por %p31, %p32
      %p34 = scmp.ne.s32.totalorder %s26, %s28
      %p35 = scmp.eq.s32.totalorder %s23, 1
      %p36 = por %p34, %p35
      %p37 = scmp.ne.s32.totalorder %s28, %s29
      %p38 = scmp.eq.s32.totalorder %s23, 0
      %p39 = por %p37, %p38
      %p40 = scmp.ne.s32.totalorder %s28, %s29
      %p41 = scmp.eq.s32.totalorder %s24, 1
      %p42 = por %p40, %p41
      %p44 = scmp.ne.s32.totalorder %s29, %s43
      %p45 = scmp.eq.s32.totalorder %s24, 0
      %p46 = por %p44, %p45
      %s48 = sadd.s32 %s47, 1
      %p51 = scmp.eq.s32.totalorder %s18, 1
      %p52 = scmp.ne.s32.totalorder %s47, %s49
      %p53 = scmp.eq.s32.totalorder %s18, 0
      %p54 = por %p52, %p53
      %p55 = scmp.ne.s32.totalorder %s47, %s49
      %p56 = scmp.eq.s32.totalorder %s23, 1
      %p57 = por %p55, %p56
      %p58 = scmp.ne.s32.totalorder %s49, %s50
      %p59 = scmp.eq.s32.totalorder %s23, 0
      %p60 = por %p58, %p59
      %p61 = scmp.ne.s32.totalorder %s49, %s50
      %p62 = scmp.eq.s32.totalorder %s24, 1
      %p63 = por %p61, %p62
      %p65 = scmp.ne.s32.totalorder %s50, %s64
      %p66 = scmp.eq.s32.totalorder %s24, 0
      %p67 = por %p65, %p66
      %s68 = ssub.s32 %s18, %s25
      %p69 = scmp.eq.s32.totalorder %s68, 0
      %s71 = sadd.s32 %s70, 1
      %s72 = scalar_select %p69, %s70, %s71
      %p75 = pneg %p69
      %p76 = scmp.eq.s32.totalorder %s18, 1
      %p77 = por %p75, %p76
      %p78 = scmp.ne.s32.totalorder %s70, %s73
      %p79 = scmp.eq.s32.totalorder %s18, 0
      %p80 = por %p78, %p79
      %p81 = scmp.ne.s32.totalorder %s70, %s73
      %p82 = scmp.eq.s32.totalorder %s23, 1
      %p83 = por %p81, %p82
      %p84 = scmp.ne.s32.totalorder %s73, %s74
      %p85 = scmp.eq.s32.totalorder %s23, 0
      %p86 = por %p84, %p85
      %p87 = scmp.ne.s32.totalorder %s73, %s74
      %p88 = scmp.eq.s32.totalorder %s24, 1
      %p89 = por %p87, %p88
      %p91 = scmp.ne.s32.totalorder %s74, %s90
      %p92 = scmp.eq.s32.totalorder %s24, 0
      %p93 = por %p91, %p92
      %s94 = ssub.s32 %s18, %s25
      %p95 = scmp.eq.s32.totalorder %s94, 0
      %s97 = sadd.s32 %s96, 1
      %s98 = scalar_select %p95, %s96, %s97
      %p101 = pneg %p95
      %p102 = scmp.eq.s32.totalorder %s18, 1
      %p103 = por %p101, %p102
      %p104 = scmp.ne.s32.totalorder %s96, %s99
      %p105 = scmp.eq.s32.totalorder %s18, 0
      %p106 = por %p104, %p105
      %p107 = scmp.ne.s32.totalorder %s96, %s99
      %p108 = scmp.eq.s32.totalorder %s23, 1
      %p109 = por %p107, %p108
      %p110 = scmp.ne.s32.totalorder %s99, %s100
      %p111 = scmp.eq.s32.totalorder %s23, 0
      %p112 = por %p110, %p111
      %p113 = scmp.ne.s32.totalorder %s99, %s100
      %p114 = scmp.eq.s32.totalorder %s24, 1
      %p115 = por %p113, %p114
      %p117 = scmp.ne.s32.totalorder %s100, %s116
      %p118 = scmp.eq.s32.totalorder %s24, 0
      %p119 = por %p117, %p118
      %s120 = ssub.s32 %s18, %s25
      %p121 = scmp.eq.s32.totalorder %s120, 0
      %s123 = sadd.s32 %s122, 1
      %s124 = scalar_select %p121, %s122, %s123
      %p127 = pneg %p121
      %p128 = scmp.eq.s32.totalorder %s18, 1
      %p129 = por %p127, %p128
      %p130 = scmp.ne.s32.totalorder %s122, %s125
      %p131 = scmp.eq.s32.totalorder %s18, 0
      %p132 = por %p130, %p131
      %p133 = scmp.ne.s32.totalorder %s122, %s125
      %p134 = scmp.eq.s32.totalorder %s23, 1
      %p135 = por %p133, %p134
      %p136 = scmp.ne.s32.totalorder %s125, %s126
      %p137 = scmp.eq.s32.totalorder %s23, 0
      %p138 = por %p136, %p137
      %p139 = scmp.ne.s32.totalorder %s125, %s126
      %p140 = scmp.eq.s32.totalorder %s24, 1
      %p141 = por %p139, %p140
      %p143 = scmp.ne.s32.totalorder %s126, %s142
      %p144 = scmp.eq.s32.totalorder %s24, 0
      %p145 = por %p143, %p144
      %s146 = ssub.s32 %s18, %s25
      %p147 = scmp.eq.s32.totalorder %s146, 0
      %s149 = sadd.s32 %s148, 1
      %s150 = scalar_select %p147, %s148, %s149
      %p153 = pneg %p147
      %p154 = scmp.eq.s32.totalorder %s18, 1
      %p155 = por %p153, %p154
      %p156 = scmp.ne.s32.totalorder %s148, %s151
      %p157 = scmp.eq.s32.totalorder %s18, 0
      %p158 = por %p156, %p157
      %p159 = scmp.ne.s32.totalorder %s148, %s151
      %p160 = scmp.eq.s32.totalorder %s23, 1
      %p161 = por %p159, %p160
      %p162 = scmp.ne.s32.totalorder %s151, %s152
      %p163 = scmp.eq.s32.totalorder %s23, 0
      %p164 = por %p162, %p163
      %p165 = scmp.ne.s32.totalorder %s151, %s152
      %p166 = scmp.eq.s32.totalorder %s24, 1
      %p167 = por %p165, %p166
      %p169 = scmp.ne.s32.totalorder %s152, %s168
      %p170 = scmp.eq.s32.totalorder %s24, 0
      %p171 = por %p169, %p170
      %s172 = ssub.s32 %s18, %s25
      %p173 = scmp.eq.s32.totalorder %s172, 0
      %s175 = sadd.s32 %s174, 1
      %s176 = scalar_select %p173, %s174, %s175
      %p179 = pneg %p173
      %p180 = scmp.eq.s32.totalorder %s18, 1
      %p181 = por %p179, %p180
      %p182 = scmp.ne.s32.totalorder %s174, %s177
      %p183 = scmp.eq.s32.totalorder %s18, 0
      %p184 = por %p182, %p183
      %p185 = scmp.ne.s32.totalorder %s174, %s177
      %p186 = scmp.eq.s32.totalorder %s23, 1
      %p187 = por %p185, %p186
      %p188 = scmp.ne.s32.totalorder %s177, %s178
      %p189 = scmp.eq.s32.totalorder %s23, 0
      %p190 = por %p188, %p189
      %p191 = scmp.ne.s32.totalorder %s177, %s178
      %p192 = scmp.eq.s32.totalorder %s24, 1
      %p193 = por %p191, %p192
      %p195 = scmp.ne.s32.totalorder %s178, %s194
      %p196 = scmp.eq.s32.totalorder %s24, 0
      %p197 = por %p195, %p196
      %s198 = ssub.s32 %s18, %s25
      %p199 = scmp.eq.s32.totalorder %s198, 0
      %s201 = sadd.s32 %s200, 1
      %s202 = scalar_select %p199, %s200, %s201
      %p205 = pneg %p199
      %p206 = scmp.eq.s32.totalorder %s18, 1
      %p207 = por %p205, %p206
      %p208 = scmp.ne.s32.totalorder %s200, %s203
      %p209 = scmp.eq.s32.totalorder %s18, 0
      %p210 = por %p208, %p209
      %p211 = scmp.ne.s32.totalorder %s200, %s203
      %p212 = scmp.eq.s32.totalorder %s23, 1
      %p213 = por %p211, %p212
      %p214 = scmp.ne.s32.totalorder %s203, %s204
      %p215 = scmp.eq.s32.totalorder %s23, 0
      %p216 = por %p214, %p215
      %p217 = scmp.ne.s32.totalorder %s203, %s204
      %p218 = scmp.eq.s32.totalorder %s24, 1
      %p219 = por %p217, %p218
      %p221 = scmp.ne.s32.totalorder %s204, %s220
      %p222 = scmp.eq.s32.totalorder %s24, 0
      %p223 = por %p221, %p222
      %s225 = sadd.s32 %s224, 1
      %p228 = scmp.eq.s32.totalorder %s18, 1
      %p229 = scmp.ne.s32.totalorder %s224, %s226
      %p230 = scmp.eq.s32.totalorder %s18, 0
      %p231 = por %p229, %p230
      %p232 = scmp.ne.s32.totalorder %s224, %s226
      %p233 = scmp.eq.s32.totalorder %s23, 1
      %p234 = por %p232, %p233
      %p235 = scmp.ne.s32.totalorder %s226, %s227
      %p236 = scmp.eq.s32.totalorder %s23, 0
      %p237 = por %p235, %p236
      %p238 = scmp.ne.s32.totalorder %s226, %s227
      %p239 = scmp.eq.s32.totalorder %s24, 1
      %p240 = por %p238, %p239
      %p242 = scmp.ne.s32.totalorder %s227, %s241
      %p243 = scmp.eq.s32.totalorder %s24, 0
      %p244 = por %p242, %p243
      %s246 = sadd.s32 %s245, 1
      %p249 = scmp.eq.s32.totalorder %s18, 1
      %p250 = scmp.ne.s32.totalorder %s245, %s247
      %p251 = scmp.eq.s32.totalorder %s18, 0
      %p252 = por %p250, %p251
      %p253 = scmp.ne.s32.totalorder %s245, %s247
      %p254 = scmp.eq.s32.totalorder %s23, 1
      %p255 = por %p253, %p254
      %p256 = scmp.ne.s32.totalorder %s247, %s248
      %p257 = scmp.eq.s32.totalorder %s23, 0
      %p258 = por %p256, %p257
      %p259 = scmp.ne.s32.totalorder %s247, %s248
      %p260 = scmp.eq.s32.totalorder %s24, 1
      %p261 = por %p259, %p260
      %p263 = scmp.ne.s32.totalorder %s248, %s262
      %p264 = scmp.eq.s32.totalorder %s24, 0
      %p265 = por %p263, %p264
      %p266 = scmp.le.s32.totalorder 1, %s18
      %p267 = scmp.lt.s32.totalorder %s18, 3
      %p268 = pnand %p266, %p267
      %p269 = pneg %p268
      // Predicated region
      $region9: #{tpu_custom_call.1} parent=5 // pred_check
        _
      $region10: #{tpu_custom_call.1} parent=5 // pred_check_branch
        %271 = sbr.rel (%p268) target = $region12
      $region11: #{tpu_custom_call.1} parent=5 // pred_region
        %s272 = ssub.s32 %s18, 1
        // Predicated region
        $region13: #{tpu_custom_call.1} parent=11 // pred_check
          %p273 = pneg %p39
        $region14: #{tpu_custom_call.1} parent=11 // pred_check_branch
          %275 = sbr.rel (%p273) target = $region16
        $region15: #{tpu_custom_call.1} parent=11 // pred_region
          %s277 = ssub.s32 256, 256
          %278 = vsyncadd [#allocation3], %s277
          %s279 = sshll.u32 [#allocation2], 4
          %s280 = int_to_ptr.vmem [resolvable:$true] %s279
          %285 = dma.hbm_to_vmem [thread:$0]  %s0, 256, %s280, [#allocation3], 128, 128, 8
        $region16: #{tpu_custom_call.1} parent=11 // pred_fallthru
          _
        // Predicated region
        $region17: #{tpu_custom_call.1} parent=11 // pred_check
          %p286 = pneg %p60
        $region18: #{tpu_custom_call.1} parent=11 // pred_check_branch
          %288 = sbr.rel (%p286) target = $region20
        $region19: #{tpu_custom_call.1} parent=11 // pred_region
          %s290 = ssub.s32 32, 32
          %291 = vsyncadd [#allocation6], %s290
          %s293 = sshll.u32 [#allocation5], 4
          %s294 = int_to_ptr.vmem [resolvable:$true] %s293
          %296 = dma.hbm_to_vmem [thread:$0]  %s1, 32, %s294, [#allocation6]
        $region20: #{tpu_custom_call.1} parent=11 // pred_fallthru
          _
        // Predicated region
        $region21: #{tpu_custom_call.1} parent=11 // pred_check
          %p297 = pneg %p237
        $region22: #{tpu_custom_call.1} parent=11 // pred_check_branch
          %299 = sbr.rel (%p297) target = $region24
        $region23: #{tpu_custom_call.1} parent=11 // pred_region
          _
        $region24: #{tpu_custom_call.1} parent=11 // pred_fallthru
          _
      $region12: #{tpu_custom_call.1} parent=5 // pred_fallthru
        _
      %p300 = scmp.lt.s32.totalorder %s18, 2
      // Predicated region
      $region25: #{tpu_custom_call.1} parent=5 // pred_check
        %p301 = pneg %p300
      $region26: #{tpu_custom_call.1} parent=5 // pred_check_branch
        %303 = sbr.rel (%p301) target = $region28
      $region27: #{tpu_custom_call.1} parent=5 // pred_region
        // Predicated region
        $region29: #{tpu_custom_call.1} parent=27 // pred_check
          %p304 = pneg %p80
        $region30: #{tpu_custom_call.1} parent=27 // pred_check_branch
          %306 = sbr.rel (%p304) target = $region32
        $region31: #{tpu_custom_call.1} parent=27 // pred_region
          %p307 = scmp.lt.s32.totalorder %s18, 1
          %s308 = scalar_select %p307, %s18, 1
          %s309 = scalar_lea.vmem %s2, %s308
        $region32: #{tpu_custom_call.1} parent=27 // pred_fallthru
          _
        // Predicated region
        $region33: #{tpu_custom_call.1} parent=27 // pred_check
          %p310 = pneg %p106
        $region34: #{tpu_custom_call.1} parent=27 // pred_check_branch
          %312 = sbr.rel (%p310) target = $region36
        $region35: #{tpu_custom_call.1} parent=27 // pred_region
          %p313 = scmp.lt.s32.totalorder %s18, 1
          %s314 = scalar_select %p313, %s18, 1
          %s315 = scalar_lea.vmem %s3, %s314
        $region36: #{tpu_custom_call.1} parent=27 // pred_fallthru
          _
        // Predicated region
        $region37: #{tpu_custom_call.1} parent=27 // pred_check
          %p316 = pneg %p132
        $region38: #{tpu_custom_call.1} parent=27 // pred_check_branch
          %318 = sbr.rel (%p316) target = $region40
        $region39: #{tpu_custom_call.1} parent=27 // pred_region
          %p319 = scmp.lt.s32.totalorder %s18, 1
          %s320 = scalar_select %p319, %s18, 1
          %s321 = smul.addr %s320, 4
          %s322 = smul.addr %s321, 4
          %s323 = scalar_lea.vmem %s4, %s322
        $region40: #{tpu_custom_call.1} parent=27 // pred_fallthru
          _
        // Predicated region
        $region41: #{tpu_custom_call.1} parent=27 // pred_check
          %p324 = pneg %p158
        $region42: #{tpu_custom_call.1} parent=27 // pred_check_branch
          %326 = sbr.rel (%p324) target = $region44
        $region43: #{tpu_custom_call.1} parent=27 // pred_region
          %p327 = scmp.lt.s32.totalorder %s18, 1
          %s328 = scalar_select %p327, %s18, 1
          %s329 = smul.addr %s328, 4
          %s330 = smul.addr %s329, 4
          %s331 = scalar_lea.vmem %s5, %s330
        $region44: #{tpu_custom_call.1} parent=27 // pred_fallthru
          _
        // Predicated region
        $region45: #{tpu_custom_call.1} parent=27 // pred_check
          %p332 = pneg %p184
        $region46: #{tpu_custom_call.1} parent=27 // pred_check_branch
          %334 = sbr.rel (%p332) target = $region48
        $region47: #{tpu_custom_call.1} parent=27 // pred_region
          %p335 = scmp.lt.s32.totalorder %s18, 1
          %s336 = scalar_select %p335, %s18, 1
          %s337 = smul.addr %s336, 4
          %s338 = smul.addr %s337, 4
          %s339 = scalar_lea.vmem %s6, %s338
        $region48: #{tpu_custom_call.1} parent=27 // pred_fallthru
          _
        // Predicated region
        $region49: #{tpu_custom_call.1} parent=27 // pred_check
          %p340 = pneg %p210
        $region50: #{tpu_custom_call.1} parent=27 // pred_check_branch
          %342 = sbr.rel (%p340) target = $region52
        $region51: #{tpu_custom_call.1} parent=27 // pred_region
          %p343 = scmp.lt.s32.totalorder %s18, 1
          %s344 = scalar_select %p343, %s18, 1
          %s345 = smul.addr %s344, 8
          %s346 = smul.addr %s345, 4
          %s347 = scalar_lea.vmem %s7, %s346
        $region52: #{tpu_custom_call.1} parent=27 // pred_fallthru
          _
      $region28: #{tpu_custom_call.1} parent=5 // pred_fallthru
        _
      %p348 = scmp.le.s32.totalorder 1, %s18
      %p349 = scmp.lt.s32.totalorder %s18, 3
      %p350 = pnand %p348, %p349
      %p351 = pneg %p350
      // Predicated region
      $region53: #{tpu_custom_call.1} parent=5 // pred_check
        _
      $region54: #{tpu_custom_call.1} parent=5 // pred_check_branch
        %353 = sbr.rel (%p350) target = $region56
      $region55: #{tpu_custom_call.1} parent=5 // pred_region
        %s354 = ssub.s32 %s18, 1
        // Predicated region
        $region57: #{tpu_custom_call.1} parent=55 // pred_check
          %p355 = pneg %p39
        $region58: #{tpu_custom_call.1} parent=55 // pred_check_branch
          %357 = sbr.rel (%p355) target = $region60
        $region59: #{tpu_custom_call.1} parent=55 // pred_region
          %358 = dma.done [#allocation3], 256
        $region60: #{tpu_custom_call.1} parent=55 // pred_fallthru
          _
        // Predicated region
        $region61: #{tpu_custom_call.1} parent=55 // pred_check
          %p359 = pneg %p60
        $region62: #{tpu_custom_call.1} parent=55 // pred_check_branch
          %361 = sbr.rel (%p359) target = $region64
        $region63: #{tpu_custom_call.1} parent=55 // pred_region
          %362 = dma.done [#allocation6], 32
        $region64: #{tpu_custom_call.1} parent=55 // pred_fallthru
          _
        %p363 = pneg %p39
        %p364 = pneg %p36
        %p365 = pneg %p60
        %p366 = pneg %p57
        %p367 = scmp.lt.s32.totalorder %s23, 1
        %s368 = scalar_select %p367, %s23, 1
        %s369 = scalar_lea.vmem %s2, %s368
        %p370 = pneg %p86
        %p371 = pneg %p83
        %p372 = scmp.lt.s32.totalorder %s23, 1
        %s373 = scalar_select %p372, %s23, 1
        %s374 = scalar_lea.vmem %s3, %s373
        %p375 = pneg %p112
        %p376 = pneg %p109
        %p377 = scmp.lt.s32.totalorder %s23, 1
        %s378 = scalar_select %p377, %s23, 1
        %s379 = smul.addr %s378, 4
        %s380 = smul.addr %s379, 4
        %s381 = scalar_lea.vmem %s4, %s380
        %p382 = pneg %p138
        %p383 = pneg %p135
        %p384 = scmp.lt.s32.totalorder %s23, 1
        %s385 = scalar_select %p384, %s23, 1
        %s386 = smul.addr %s385, 4
        %s387 = smul.addr %s386, 4
        %s388 = scalar_lea.vmem %s5, %s387
        %p389 = pneg %p164
        %p390 = pneg %p161
        %p391 = scmp.lt.s32.totalorder %s23, 1
        %s392 = scalar_select %p391, %s23, 1
        %s393 = smul.addr %s392, 4
        %s394 = smul.addr %s393, 4
        %s395 = scalar_lea.vmem %s6, %s394
        %p396 = pneg %p190
        %p397 = pneg %p187
        %p398 = scmp.lt.s32.totalorder %s23, 1
        %s399 = scalar_select %p398, %s23, 1
        %s400 = smul.addr %s399, 8
        %s401 = smul.addr %s400, 4
        %s402 = scalar_lea.vmem %s7, %s401
        %p403 = pneg %p216
        %p404 = pneg %p213
        %p405 = pneg %p237
        %p406 = pneg %p234
        %p407 = pneg %p258
        %p408 = pneg %p255
        %p409 = scmp.lt.s32.totalorder %s23, 1
        %s410 = scalar_select %p409, %s23, 1
        %s411 = scalar_lea.vmem %s2, %s410
        %p412 = scmp.lt.s32.totalorder %s23, 1
        %s413 = scalar_select %p412, %s23, 1
        %s414 = scalar_lea.vmem %s3, %s413
        %p415 = scmp.lt.s32.totalorder %s23, 1
        %s416 = scalar_select %p415, %s23, 1
        %s417 = smul.addr %s416, 4
        %s418 = smul.addr %s417, 4
        %s419 = scalar_lea.vmem %s4, %s418
        %p420 = scmp.lt.s32.totalorder %s23, 1
        %s421 = scalar_select %p420, %s23, 1
        %s422 = smul.addr %s421, 4
        %s423 = smul.addr %s422, 4
        %s424 = scalar_lea.vmem %s5, %s423
        %p425 = scmp.lt.s32.totalorder %s23, 1
        %s426 = scalar_select %p425, %s23, 1
        %s427 = smul.addr %s426, 4
        %s428 = smul.addr %s427, 4
        %s429 = scalar_lea.vmem %s6, %s428
        %p430 = scmp.lt.s32.totalorder %s23, 1
        %s431 = scalar_select %p430, %s23, 1
        %s432 = smul.addr %s431, 8
        %s433 = smul.addr %s432, 4
        %s434 = scalar_lea.vmem %s7, %s433
        %p436 = scmp.eq.s32.totalorder %s23, 0
        // Predicated region
        $region65: #{tpu_custom_call.1} parent=55 // pred_check
          %p437 = pneg %p436
        $region66: #{tpu_custom_call.1} parent=55 // pred_check_branch
          %439 = sbr.rel (%p437) target = $region68
        $region67: #{tpu_custom_call.1} parent=55 // pred_region
          %v440 = vld [vmem:[#allocation2] sm:$0xff]
          %v441 = vld [vmem:[#allocation2 + $0x8] sm:$0xff]
          %vm442 = vcmask 261120
          %443 = vst.msk [vmem:[#allocation7] sm:$0xff] %vm442, %v440
          %444 = vst.msk [vmem:[#allocation7 + $0x8] sm:$0xff] %vm442, %v441
        $region68: #{tpu_custom_call.1} parent=55 // pred_fallthru
          _
        %v445 = vld [vmem:[#allocation7] sm:$0xff]
        %v446 = vld [vmem:[#allocation7 + $0x8] sm:$0xff]
        %v447 = vld [vmem:[#allocation5] sm:$0x3]
        %v448 = vld [vmem:[%s411] sm:$0x1]
        %v449 = vmul.f32 %v445, %v445
        %v450 = vmul.f32 %v446, %v446
        %vm451 = vcmask 261120
        %v452 = vsel %vm451, %v449, 0.0
        %453 = vadd.xlane.f32.xlu0 %v452
        %v454 = vpop.xlane.xlu0 %453
        %v455 = vsel %vm451, %v450, 0.0
        %456 = vadd.xlane.f32.xlu0 %v455
        %v457 = vpop.xlane.xlu0 %456
        %v458 = vrcp.pop 32.0
        %v459 = vmul.f32 %v454, %v458
        %v460 = vmul.f32 %v457, %v458
        %v461 = vadd.f32 %v459, 1e-06
        %v462 = vadd.f32 %v460, 1e-06
        %v463 = vrsqrt.pop %v461
        %v464 = vrsqrt.pop %v462
        %v465 = vmul.f32 %v445, %v463
        %v466 = vmul.f32 %v446, %v464
        %v467 = vadd.f32 %v448, 1.0
        %v469 = vlaneseq
        %v470 = vshrl.u32 %v469, 7
        %v471 = vsub.s32 0, %v470
        %v472 = vrot.slane %v467, %v471
        %v474 = vmul.f32 %v465, %v472
        %v475 = vmul.f32 %v466, %v472
        %v476 = vpack.c.bf16 %v475, %v474
        %v477 = vld [vmem:[%s419] sm:$0xf]
        %v478 = vld [vmem:[%s419 + $0x4] sm:$0xf]
        %v479 = vld [vmem:[%s419 + $0x8] sm:$0xf]
        %v480 = vld [vmem:[%s419 + $0xc] sm:$0xf]
        %v485 = vunpack.c.l.b16 %v477
        %v486 = vunpack.c.l.b16 %v478
        %v487 = vunpack.c.l.b16 %v479
        %v488 = vunpack.c.l.b16 %v480
        %v489 = vpack.c.b16 %v486, %v485
        %v490 = vpack.c.b16 %v488, %v487
        %v494 = vsel %vm451, %v476, 0
        %496 = vmatprep.subr.bf16.mxu0 0
        %497 = vmatpush1.bf16.msra.mxu0 0
        %498 = vmatprep.subr.bf16.mxu0 0
        %499 = vmatpush1.bf16.msra.mxu0 0
        %500 = vmatprep.subr.bf16.mxu0 0
        %501 = vmatpush1.bf16.msra.mxu0 0
        %502 = vmatprep.subr.bf16.mxu0 0
        %503 = vmatpush1.bf16.msra.mxu0 0
        %504 = vmatprep.subr.bf16.mxu0 0
        %505 = vmatpush1.bf16.msra.mxu0 0
        %506 = vmatprep.subr.bf16.mxu0 0
        %507 = vmatpush1.bf16.msra.mxu0 0
        %508 = vmatprep.subr.bf16.mxu0 0
        %509 = vmatpush1.bf16.msra.mxu0 %v490
        %510 = vmatprep.subr.bf16.mxu0 0
        %511 = vmatpush1.bf16.msra.mxu0 %v489
        %512 = vmatprep.subr.bf16.mxu0 0
        %513 = vmatpush2.bf16.msra.mxu0 0
        %514 = vmatprep.subr.bf16.mxu0 0
        %515 = vmatpush2.bf16.msra.mxu0 0
        %516 = vmatprep.subr.bf16.mxu0 0
        %517 = vmatpush2.bf16.msra.mxu0 0
        %518 = vmatprep.subr.bf16.mxu0 0
        %519 = vmatpush2.bf16.msra.mxu0 0
        %520 = vmatprep.subr.bf16.mxu0 0
        %521 = vmatpush2.bf16.msra.mxu0 0
        %522 = vmatprep.subr.bf16.mxu0 0
        %523 = vmatpush2.bf16.msra.mxu0 0
        %524 = vmatprep.subr.bf16.mxu0 0
        %525 = vmatpush2.bf16.msra.mxu0 0
        %526 = vmatprep.subr.bf16.mxu0 0
        %527 = vmatpush2.bf16.msra.mxu0 0
        %528 = vmatprep.mubr.bf16.mxu0 0
        %529 = vmatmul.mubr.bf16.gmra.mxu0 %v494
        %v530 = vpop.f32.mrf.mxu0
        %v531 = vadd.f32 0.0, %v530
        %v532 = vpop.f32.mrf.mxu0
        %v533 = vpop.f32.mrf.mxu0
        %v534 = vadd.f32 0.0, %v533
        %v535 = vpop.f32.mrf.mxu0
        %536 = vdwg.mxu0
        %v537 = vpack.c.bf16 %v531, %v531
        %v538 = vpack.c.bf16 %v534, %v534
        %540 = vrot.lane.b32.xlu0 %v537, 96
        %v541 = vpop.permute.xlu0 %540
        %vm542 = vcmask 64512
        %v544 = vsel %vm542, %v537, 0
        %v547 = vsel %vm542, %v541, 0
        %549 = vmatprep.subr.bf16.mxu0 0
        %550 = vmatpush1.bf16.xpose.msra.mxu0 0
        %551 = vmatprep.subr.bf16.mxu0 0
        %552 = vmatpush1.bf16.xpose.msra.mxu0 0
        %553 = vmatprep.subr.bf16.mxu0 0
        %554 = vmatpush1.bf16.xpose.msra.mxu0 0
        %555 = vmatprep.subr.bf16.mxu0 0
        %556 = vmatpush1.bf16.xpose.msra.mxu0 0
        %557 = vmatprep.subr.bf16.mxu0 0
        %558 = vmatpush1.bf16.xpose.msra.mxu0 0
        %559 = vmatprep.subr.bf16.mxu0 0
        %560 = vmatpush1.bf16.xpose.msra.mxu0 0
        %561 = vmatprep.subr.bf16.mxu0 0
        %562 = vmatpush1.bf16.xpose.msra.mxu0 0
        %563 = vmatprep.subr.bf16.mxu0 0
        %564 = vmatpush1.bf16.xpose.msra.mxu0 %v547
        %565 = vmatprep.subr.bf16.mxu0 0
        %566 = vmatpush2.bf16.xpose.msra.mxu0 0
        %567 = vmatprep.subr.bf16.mxu0 0
        %568 = vmatpush2.bf16.xpose.msra.mxu0 0
        %569 = vmatprep.subr.bf16.mxu0 0
        %570 = vmatpush2.bf16.xpose.msra.mxu0 0
        %571 = vmatprep.subr.bf16.mxu0 0
        %572 = vmatpush2.bf16.xpose.msra.mxu0 0
        %573 = vmatprep.subr.bf16.mxu0 0
        %574 = vmatpush2.bf16.xpose.msra.mxu0 0
        %575 = vmatprep.subr.bf16.mxu0 0
        %576 = vmatpush2.bf16.xpose.msra.mxu0 0
        %577 = vmatprep.subr.bf16.mxu0 0
        %578 = vmatpush2.bf16.xpose.msra.mxu0 0
        %579 = vmatprep.subr.bf16.mxu0 0
        %580 = vmatpush2.bf16.xpose.msra.mxu0 0
        %581 = vmatprep.mubr.bf16.mxu0 0
        %582 = vmatmul.mubr.bf16.gmra.mxu0 %v544
        %v583 = vpop.f32.mrf.mxu0
        %v584 = vadd.f32 0.0, %v583
        %v585 = vpop.f32.mrf.mxu0
        %v586 = vpop.f32.mrf.mxu0
        %v587 = vpop.f32.mrf.mxu0
        %588 = vdwg.mxu0
        %590 = vrot.lane.b32.xlu0 %v538, 96
        %v591 = vpop.permute.xlu0 %590
        %v593 = vsel %vm542, %v538, 0
        %v596 = vsel %vm542, %v591, 0
        %598 = vmatprep.subr.bf16.mxu0 0
        %599 = vmatpush1.bf16.xpose.msra.mxu0 0
        %600 = vmatprep.subr.bf16.mxu0 0
        %601 = vmatpush1.bf16.xpose.msra.mxu0 0
        %602 = vmatprep.subr.bf16.mxu0 0
        %603 = vmatpush1.bf16.xpose.msra.mxu0 0
        %604 = vmatprep.subr.bf16.mxu0 0
        %605 = vmatpush1.bf16.xpose.msra.mxu0 0
        %606 = vmatprep.subr.bf16.mxu0 0
        %607 = vmatpush1.bf16.xpose.msra.mxu0 0
        %608 = vmatprep.subr.bf16.mxu0 0
        %609 = vmatpush1.bf16.xpose.msra.mxu0 0
        %610 = vmatprep.subr.bf16.mxu0 0
        %611 = vmatpush1.bf16.xpose.msra.mxu0 0
        %612 = vmatprep.subr.bf16.mxu0 0
        %613 = vmatpush1.bf16.xpose.msra.mxu0 %v596
        %614 = vmatprep.subr.bf16.mxu0 0
        %615 = vmatpush2.bf16.xpose.msra.mxu0 0
        %616 = vmatprep.subr.bf16.mxu0 0
        %617 = vmatpush2.bf16.xpose.msra.mxu0 0
        %618 = vmatprep.subr.bf16.mxu0 0
        %619 = vmatpush2.bf16.xpose.msra.mxu0 0
        %620 = vmatprep.subr.bf16.mxu0 0
        %621 = vmatpush2.bf16.xpose.msra.mxu0 0
        %622 = vmatprep.subr.bf16.mxu0 0
        %623 = vmatpush2.bf16.xpose.msra.mxu0 0
        %624 = vmatprep.subr.bf16.mxu0 0
        %625 = vmatpush2.bf16.xpose.msra.mxu0 0
        %626 = vmatprep.subr.bf16.mxu0 0
        %627 = vmatpush2.bf16.xpose.msra.mxu0 0
        %628 = vmatprep.subr.bf16.mxu0 0
        %629 = vmatpush2.bf16.xpose.msra.mxu0 0
        %630 = vmatprep.mubr.bf16.mxu0 0
        %631 = vmatmul.mubr.bf16.gmra.mxu0 %v593
        %v632 = vpop.f32.mrf.mxu0
        %v633 = vadd.f32 0.0, %v632
        %v634 = vpop.f32.mrf.mxu0
        %v635 = vpop.f32.mrf.mxu0
        %v636 = vpop.f32.mrf.mxu0
        %637 = vdwg.mxu0
        %v638 = vmul.f32 %v584, 0.35355338
        %v639 = vmul.f32 %v633, 0.35355338
        %v642 = vunpack.c.l.s4 1966171168
        %v643 = vunpack.c.0.s8 %v642
        %v644 = vlaneseq
        %v645 = vshrl.u32 %v644, 7
        %v646 = vsub.s32 %v643, %v645
        %v647 = vrot.slane %v447, %v646
        %v648 = vcombine.high %v647, %v647
        %v650 = vunpack.c.l.s4 1966171168
        %v651 = vunpack.c.0.s8 %v650
        %v652 = vlaneseq
        %v653 = vshrl.u32 %v652, 7
        %v654 = vsub.s32 %v651, %v653
        %v655 = vrot.slane %v647, %v654
        %v657 = vunpack.c.l.s4 1966171168
        %v658 = vunpack.c.0.s8 %v657
        %v659 = vlaneseq
        %v660 = vshrl.u32 %v659, 7
        %v661 = vsub.s32 %v658, %v660
        %v662 = vrot.slane %v648, %v661
        %v663 = vlaneseq
        %v664 = vshrl.u32 %v663, 7
        %v665 = vsub.s32 0, %v664
        %v666 = vrot.slane %v655, %v665
        %v667 = vlaneseq
        %v668 = vshrl.u32 %v667, 7
        %v669 = vsub.s32 0, %v668
        %v670 = vrot.slane %v662, %v669
        %v673 = vadd.f32 %v638, %v666
        %v674 = vadd.f32 %v639, %v670
        %v675 = vsel %vm542, %v673, -inf
        %676 = vmax.xlane.f32.xlu0 %v675
        %v677 = vpop.xlane.xlu0 %676
        %v678 = vsel %vm542, %v674, -inf
        %679 = vmax.xlane.f32.xlu0 %v678
        %v680 = vpop.xlane.xlu0 %679
        %v681 = vsub.f32 %v673, %v677
        %v682 = vsub.f32 %v674, %v680
        %v683 = vmul.f32 %v681, 1.442695
        %v684 = vpow.pop %v683
        %v685 = vmul.f32 %v682, 1.442695
        %v686 = vpow.pop %v685
        %v687 = vsel %vm542, %v684, 0.0
        %688 = vadd.xlane.f32.xlu0 %v687
        %v689 = vpop.xlane.xlu0 %688
        %v690 = vsel %vm542, %v686, 0.0
        %691 = vadd.xlane.f32.xlu0 %v690
        %v692 = vpop.xlane.xlu0 %691
        %v693 = vrcp.pop %v689
        %v694 = vrcp.pop %v692
        %v695 = vmul.f32 %v684, %v693
        %v696 = vmul.f32 %v686, %v694
        %v697 = vpack.c.bf16 %v695, %v695
        %v698 = vpack.c.bf16 %v696, %v696
        %699 = vrot.lane.b32.xlu0 %v537, 64
        %v700 = vpop.permute.xlu0 %699
        %v702 = vsel %vm542, %v697, 0
        %vm704 = vcmask 1043456
        %v706 = vsel %vm704, %v700, 0
        %708 = vmatprep.subr.bf16.mxu0 0
        %709 = vmatpush1.bf16.msra.mxu0 0
        %710 = vmatprep.subr.bf16.mxu0 0
        %711 = vmatpush1.bf16.msra.mxu0 0
        %712 = vmatprep.subr.bf16.mxu0 0
        %713 = vmatpush1.bf16.msra.mxu0 0
        %714 = vmatprep.subr.bf16.mxu0 0
        %715 = vmatpush1.bf16.msra.mxu0 0
        %716 = vmatprep.subr.bf16.mxu0 0
        %717 = vmatpush1.bf16.msra.mxu0 0
        %718 = vmatprep.subr.bf16.mxu0 0
        %719 = vmatpush1.bf16.msra.mxu0 0
        %720 = vmatprep.subr.bf16.mxu0 0
        %721 = vmatpush1.bf16.msra.mxu0 0
        %722 = vmatprep.subr.bf16.mxu0 0
        %723 = vmatpush1.bf16.msra.mxu0 %v706
        %724 = vmatprep.subr.bf16.mxu0 0
        %725 = vmatpush2.bf16.msra.mxu0 0
        %726 = vmatprep.subr.bf16.mxu0 0
        %727 = vmatpush2.bf16.msra.mxu0 0
        %728 = vmatprep.subr.bf16.mxu0 0
        %729 = vmatpush2.bf16.msra.mxu0 0
        %730 = vmatprep.subr.bf16.mxu0 0
        %731 = vmatpush2.bf16.msra.mxu0 0
        %732 = vmatprep.subr.bf16.mxu0 0
        %733 = vmatpush2.bf16.msra.mxu0 0
        %734 = vmatprep.subr.bf16.mxu0 0
        %735 = vmatpush2.bf16.msra.mxu0 0
        %736 = vmatprep.subr.bf16.mxu0 0
        %737 = vmatpush2.bf16.msra.mxu0 0
        %738 = vmatprep.subr.bf16.mxu0 0
        %739 = vmatpush2.bf16.msra.mxu0 0
        %740 = vmatprep.mubr.bf16.mxu0 0
        %741 = vmatmul.mubr.bf16.gmra.mxu0 %v702
        %v742 = vpop.f32.mrf.mxu0
        %v743 = vadd.f32 0.0, %v742
        %v744 = vpop.f32.mrf.mxu0
        %v745 = vpop.f32.mrf.mxu0
        %v746 = vpop.f32.mrf.mxu0
        %747 = vdwg.mxu0
        %748 = vrot.lane.b32.xlu0 %v538, 64
        %v749 = vpop.permute.xlu0 %748
        %v751 = vsel %vm542, %v698, 0
        %v754 = vsel %vm704, %v749, 0
        %756 = vmatprep.subr.bf16.mxu0 0
        %757 = vmatpush1.bf16.msra.mxu0 0
        %758 = vmatprep.subr.bf16.mxu0 0
        %759 = vmatpush1.bf16.msra.mxu0 0
        %760 = vmatprep.subr.bf16.mxu0 0
        %761 = vmatpush1.bf16.msra.mxu0 0
        %762 = vmatprep.subr.bf16.mxu0 0
        %763 = vmatpush1.bf16.msra.mxu0 0
        %764 = vmatprep.subr.bf16.mxu0 0
        %765 = vmatpush1.bf16.msra.mxu0 0
        %766 = vmatprep.subr.bf16.mxu0 0
        %767 = vmatpush1.bf16.msra.mxu0 0
        %768 = vmatprep.subr.bf16.mxu0 0
        %769 = vmatpush1.bf16.msra.mxu0 0
        %770 = vmatprep.subr.bf16.mxu0 0
        %771 = vmatpush1.bf16.msra.mxu0 %v754
        %772 = vmatprep.subr.bf16.mxu0 0
        %773 = vmatpush2.bf16.msra.mxu0 0
        %774 = vmatprep.subr.bf16.mxu0 0
        %775 = vmatpush2.bf16.msra.mxu0 0
        %776 = vmatprep.subr.bf16.mxu0 0
        %777 = vmatpush2.bf16.msra.mxu0 0
        %778 = vmatprep.subr.bf16.mxu0 0
        %779 = vmatpush2.bf16.msra.mxu0 0
        %780 = vmatprep.subr.bf16.mxu0 0
        %781 = vmatpush2.bf16.msra.mxu0 0
        %782 = vmatprep.subr.bf16.mxu0 0
        %783 = vmatpush2.bf16.msra.mxu0 0
        %784 = vmatprep.subr.bf16.mxu0 0
        %785 = vmatpush2.bf16.msra.mxu0 0
        %786 = vmatprep.subr.bf16.mxu0 0
        %787 = vmatpush2.bf16.msra.mxu0 0
        %788 = vmatprep.mubr.bf16.mxu0 0
        %789 = vmatmul.mubr.bf16.gmra.mxu0 %v751
        %v790 = vpop.f32.mrf.mxu0
        %v791 = vadd.f32 0.0, %v790
        %v792 = vpop.f32.mrf.mxu0
        %v793 = vpop.f32.mrf.mxu0
        %v794 = vpop.f32.mrf.mxu0
        %795 = vdwg.mxu0
        %796 = vrot.lane.b32.xlu0 %v537, 120
        %v797 = vpop.permute.xlu0 %796
        %798 = vrot.lane.b32.xlu0 %v537, 88
        %v799 = vpop.permute.xlu0 %798
        %v801 = vsel %vm542, %v797, 0
        %v804 = vsel %vm542, %v799, 0
        %806 = vmatprep.subr.bf16.mxu0 0
        %807 = vmatpush1.bf16.xpose.msra.mxu0 0
        %808 = vmatprep.subr.bf16.mxu0 0
        %809 = vmatpush1.bf16.xpose.msra.mxu0 0
        %810 = vmatprep.subr.bf16.mxu0 0
        %811 = vmatpush1.bf16.xpose.msra.mxu0 0
        %812 = vmatprep.subr.bf16.mxu0 0
        %813 = vmatpush1.bf16.xpose.msra.mxu0 0
        %814 = vmatprep.subr.bf16.mxu0 0
        %815 = vmatpush1.bf16.xpose.msra.mxu0 0
        %816 = vmatprep.subr.bf16.mxu0 0
        %817 = vmatpush1.bf16.xpose.msra.mxu0 0
        %818 = vmatprep.subr.bf16.mxu0 0
        %819 = vmatpush1.bf16.xpose.msra.mxu0 0
        %820 = vmatprep.subr.bf16.mxu0 0
        %821 = vmatpush1.bf16.xpose.msra.mxu0 %v804
        %822 = vmatprep.subr.bf16.mxu0 0
        %823 = vmatpush2.bf16.xpose.msra.mxu0 0
        %824 = vmatprep.subr.bf16.mxu0 0
        %825 = vmatpush2.bf16.xpose.msra.mxu0 0
        %826 = vmatprep.subr.bf16.mxu0 0
        %827 = vmatpush2.bf16.xpose.msra.mxu0 0
        %828 = vmatprep.subr.bf16.mxu0 0
        %829 = vmatpush2.bf16.xpose.msra.mxu0 0
        %830 = vmatprep.subr.bf16.mxu0 0
        %831 = vmatpush2.bf16.xpose.msra.mxu0 0
        %832 = vmatprep.subr.bf16.mxu0 0
        %833 = vmatpush2.bf16.xpose.msra.mxu0 0
        %834 = vmatprep.subr.bf16.mxu0 0
        %835 = vmatpush2.bf16.xpose.msra.mxu0 0
        %836 = vmatprep.subr.bf16.mxu0 0
        %837 = vmatpush2.bf16.xpose.msra.mxu0 0
        %838 = vmatprep.mubr.bf16.mxu0 0
        %839 = vmatmul.mubr.bf16.gmra.mxu0 %v801
        %v840 = vpop.f32.mrf.mxu0
        %v841 = vadd.f32 0.0, %v840
        %v842 = vpop.f32.mrf.mxu0
        %v843 = vpop.f32.mrf.mxu0
        %v844 = vpop.f32.mrf.mxu0
        %845 = vdwg.mxu0
        %846 = vrot.lane.b32.xlu0 %v538, 120
        %v847 = vpop.permute.xlu0 %846
        %848 = vrot.lane.b32.xlu0 %v538, 88
        %v849 = vpop.permute.xlu0 %848
        %v851 = vsel %vm542, %v847, 0
        %v854 = vsel %vm542, %v849, 0
        %856 = vmatprep.subr.bf16.mxu0 0
        %857 = vmatpush1.bf16.xpose.msra.mxu0 0
        %858 = vmatprep.subr.bf16.mxu0 0
        %859 = vmatpush1.bf16.xpose.msra.mxu0 0
        %860 = vmatprep.subr.bf16.mxu0 0
        %861 = vmatpush1.bf16.xpose.msra.mxu0 0
        %862 = vmatprep.subr.bf16.mxu0 0
        %863 = vmatpush1.bf16.xpose.msra.mxu0 0
        %864 = vmatprep.subr.bf16.mxu0 0
        %865 = vmatpush1.bf16.xpose.msra.mxu0 0
        %866 = vmatprep.subr.bf16.mxu0 0
        %867 = vmatpush1.bf16.xpose.msra.mxu0 0
        %868 = vmatprep.subr.bf16.mxu0 0
        %869 = vmatpush1.bf16.xpose.msra.mxu0 0
        %870 = vmatprep.subr.bf16.mxu0 0
        %871 = vmatpush1.bf16.xpose.msra.mxu0 %v854
        %872 = vmatprep.subr.bf16.mxu0 0
        %873 = vmatpush2.bf16.xpose.msra.mxu0 0
        %874 = vmatprep.subr.bf16.mxu0 0
        %875 = vmatpush2.bf16.xpose.msra.mxu0 0
        %876 = vmatprep.subr.bf16.mxu0 0
        %877 = vmatpush2.bf16.xpose.msra.mxu0 0
        %878 = vmatprep.subr.bf16.mxu0 0
        %879 = vmatpush2.bf16.xpose.msra.mxu0 0
        %880 = vmatprep.subr.bf16.mxu0 0
        %881 = vmatpush2.bf16.xpose.msra.mxu0 0
        %882 = vmatprep.subr.bf16.mxu0 0
        %883 = vmatpush2.bf16.xpose.msra.mxu0 0
        %884 = vmatprep.subr.bf16.mxu0 0
        %885 = vmatpush2.bf16.xpose.msra.mxu0 0
        %886 = vmatprep.subr.bf16.mxu0 0
        %887 = vmatpush2.bf16.xpose.msra.mxu0 0
        %888 = vmatprep.mubr.bf16.mxu0 0
        %889 = vmatmul.mubr.bf16.gmra.mxu0 %v851
        %v890 = vpop.f32.mrf.mxu0
        %v891 = vadd.f32 0.0, %v890
        %v892 = vpop.f32.mrf.mxu0
        %v893 = vpop.f32.mrf.mxu0
        %v894 = vpop.f32.mrf.mxu0
        %895 = vdwg.mxu0
        %v896 = vmul.f32 %v841, 0.35355338
        %v897 = vmul.f32 %v891, 0.35355338
        %v898 = vadd.f32 %v896, %v666
        %v899 = vadd.f32 %v897, %v670
        %v900 = vsel %vm542, %v898, -inf
        %901 = vmax.xlane.f32.xlu0 %v900
        %v902 = vpop.xlane.xlu0 %901
        %v903 = vsel %vm542, %v899, -inf
        %904 = vmax.xlane.f32.xlu0 %v903
        %v905 = vpop.xlane.xlu0 %904
        %v906 = vsub.f32 %v898, %v902
        %v907 = vsub.f32 %v899, %v905
        %v908 = vmul.f32 %v906, 1.442695
        %v909 = vpow.pop %v908
        %v910 = vmul.f32 %v907, 1.442695
        %v911 = vpow.pop %v910
        %v912 = vsel %vm542, %v909, 0.0
        %913 = vadd.xlane.f32.xlu0 %v912
        %v914 = vpop.xlane.xlu0 %913
        %v915 = vsel %vm542, %v911, 0.0
        %916 = vadd.xlane.f32.xlu0 %v915
        %v917 = vpop.xlane.xlu0 %916
        %v918 = vrcp.pop %v914
        %v919 = vrcp.pop %v917
        %v920 = vmul.f32 %v909, %v918
        %v921 = vmul.f32 %v911, %v919
        %v922 = vpack.c.bf16 %v920, %v920
        %v923 = vpack.c.bf16 %v921, %v921
        %924 = vrot.lane.b32.xlu0 %v537, 56
        %v925 = vpop.permute.xlu0 %924
        %v927 = vsel %vm542, %v922, 0
        %v930 = vsel %vm704, %v925, 0
        %932 = vmatprep.subr.bf16.mxu0 0
        %933 = vmatpush1.bf16.msra.mxu0 0
        %934 = vmatprep.subr.bf16.mxu0 0
        %935 = vmatpush1.bf16.msra.mxu0 0
        %936 = vmatprep.subr.bf16.mxu0 0
        %937 = vmatpush1.bf16.msra.mxu0 0
        %938 = vmatprep.subr.bf16.mxu0 0
        %939 = vmatpush1.bf16.msra.mxu0 0
        %940 = vmatprep.subr.bf16.mxu0 0
        %941 = vmatpush1.bf16.msra.mxu0 0
        %942 = vmatprep.subr.bf16.mxu0 0
        %943 = vmatpush1.bf16.msra.mxu0 0
        %944 = vmatprep.subr.bf16.mxu0 0
        %945 = vmatpush1.bf16.msra.mxu0 0
        %946 = vmatprep.subr.bf16.mxu0 0
        %947 = vmatpush1.bf16.msra.mxu0 %v930
        %948 = vmatprep.subr.bf16.mxu0 0
        %949 = vmatpush2.bf16.msra.mxu0 0
        %950 = vmatprep.subr.bf16.mxu0 0
        %951 = vmatpush2.bf16.msra.mxu0 0
        %952 = vmatprep.subr.bf16.mxu0 0
        %953 = vmatpush2.bf16.msra.mxu0 0
        %954 = vmatprep.subr.bf16.mxu0 0
        %955 = vmatpush2.bf16.msra.mxu0 0
        %956 = vmatprep.subr.bf16.mxu0 0
        %957 = vmatpush2.bf16.msra.mxu0 0
        %958 = vmatprep.subr.bf16.mxu0 0
        %959 = vmatpush2.bf16.msra.mxu0 0
        %960 = vmatprep.subr.bf16.mxu0 0
        %961 = vmatpush2.bf16.msra.mxu0 0
        %962 = vmatprep.subr.bf16.mxu0 0
        %963 = vmatpush2.bf16.msra.mxu0 0
        %964 = vmatprep.mubr.bf16.mxu0 0
        %965 = vmatmul.mubr.bf16.gmra.mxu0 %v927
        %v966 = vpop.f32.mrf.mxu0
        %v967 = vadd.f32 0.0, %v966
        %v968 = vpop.f32.mrf.mxu0
        %v969 = vpop.f32.mrf.mxu0
        %v970 = vpop.f32.mrf.mxu0
        %971 = vdwg.mxu0
        %972 = vrot.lane.b32.xlu0 %v538, 56
        %v973 = vpop.permute.xlu0 %972
        %v975 = vsel %vm542, %v923, 0
        %v978 = vsel %vm704, %v973, 0
        %980 = vmatprep.subr.bf16.mxu0 0
        %981 = vmatpush1.bf16.msra.mxu0 0
        %982 = vmatprep.subr.bf16.mxu0 0
        %983 = vmatpush1.bf16.msra.mxu0 0
        %984 = vmatprep.subr.bf16.mxu0 0
        %985 = vmatpush1.bf16.msra.mxu0 0
        %986 = vmatprep.subr.bf16.mxu0 0
        %987 = vmatpush1.bf16.msra.mxu0 0
        %988 = vmatprep.subr.bf16.mxu0 0
        %989 = vmatpush1.bf16.msra.mxu0 0
        %990 = vmatprep.subr.bf16.mxu0 0
        %991 = vmatpush1.bf16.msra.mxu0 0
        %992 = vmatprep.subr.bf16.mxu0 0
        %993 = vmatpush1.bf16.msra.mxu0 0
        %994 = vmatprep.subr.bf16.mxu0 0
        %995 = vmatpush1.bf16.msra.mxu0 %v978
        %996 = vmatprep.subr.bf16.mxu0 0
        %997 = vmatpush2.bf16.msra.mxu0 0
        %998 = vmatprep.subr.bf16.mxu0 0
        %999 = vmatpush2.bf16.msra.mxu0 0
        %1000 = vmatprep.subr.bf16.mxu0 0
        %1001 = vmatpush2.bf16.msra.mxu0 0
        %1002 = vmatprep.subr.bf16.mxu0 0
        %1003 = vmatpush2.bf16.msra.mxu0 0
        %1004 = vmatprep.subr.bf16.mxu0 0
        %1005 = vmatpush2.bf16.msra.mxu0 0
        %1006 = vmatprep.subr.bf16.mxu0 0
        %1007 = vmatpush2.bf16.msra.mxu0 0
        %1008 = vmatprep.subr.bf16.mxu0 0
        %1009 = vmatpush2.bf16.msra.mxu0 0
        %1010 = vmatprep.subr.bf16.mxu0 0
        %1011 = vmatpush2.bf16.msra.mxu0 0
        %1012 = vmatprep.mubr.bf16.mxu0 0
        %1013 = vmatmul.mubr.bf16.gmra.mxu0 %v975
        %v1014 = vpop.f32.mrf.mxu0
        %v1015 = vadd.f32 0.0, %v1014
        %v1016 = vpop.f32.mrf.mxu0
        %v1017 = vpop.f32.mrf.mxu0
        %v1018 = vpop.f32.mrf.mxu0
        %1019 = vdwg.mxu0
        %1020 = vrot.lane.b32.xlu0 %v537, 112
        %v1021 = vpop.permute.xlu0 %1020
        %1022 = vrot.lane.b32.xlu0 %v537, 80
        %v1023 = vpop.permute.xlu0 %1022
        %v1025 = vsel %vm542, %v1021, 0
        %v1028 = vsel %vm542, %v1023, 0
        %1030 = vmatprep.subr.bf16.mxu0 0
        %1031 = vmatpush1.bf16.xpose.msra.mxu0 0
        %1032 = vmatprep.subr.bf16.mxu0 0
        %1033 = vmatpush1.bf16.xpose.msra.mxu0 0
        %1034 = vmatprep.subr.bf16.mxu0 0
        %1035 = vmatpush1.bf16.xpose.msra.mxu0 0
        %1036 = vmatprep.subr.bf16.mxu0 0
        %1037 = vmatpush1.bf16.xpose.msra.mxu0 0
        %1038 = vmatprep.subr.bf16.mxu0 0
        %1039 = vmatpush1.bf16.xpose.msra.mxu0 0
        %1040 = vmatprep.subr.bf16.mxu0 0
        %1041 = vmatpush1.bf16.xpose.msra.mxu0 0
        %1042 = vmatprep.subr.bf16.mxu0 0
        %1043 = vmatpush1.bf16.xpose.msra.mxu0 0
        %1044 = vmatprep.subr.bf16.mxu0 0
        %1045 = vmatpush1.bf16.xpose.msra.mxu0 %v1028
        %1046 = vmatprep.subr.bf16.mxu0 0
        %1047 = vmatpush2.bf16.xpose.msra.mxu0 0
        %1048 = vmatprep.subr.bf16.mxu0 0
        %1049 = vmatpush2.bf16.xpose.msra.mxu0 0
        %1050 = vmatprep.subr.bf16.mxu0 0
        %1051 = vmatpush2.bf16.xpose.msra.mxu0 0
        %1052 = vmatprep.subr.bf16.mxu0 0
        %1053 = vmatpush2.bf16.xpose.msra.mxu0 0
        %1054 = vmatprep.subr.bf16.mxu0 0
        %1055 = vmatpush2.bf16.xpose.msra.mxu0 0
        %1056 = vmatprep.subr.bf16.mxu0 0
        %1057 = vmatpush2.bf16.xpose.msra.mxu0 0
        %1058 = vmatprep.subr.bf16.mxu0 0
        %1059 = vmatpush2.bf16.xpose.msra.mxu0 0
        %1060 = vmatprep.subr.bf16.mxu0 0
        %1061 = vmatpush2.bf16.xpose.msra.mxu0 0
        %1062 = vmatprep.mubr.bf16.mxu0 0
        %1063 = vmatmul.mubr.bf16.gmra.mxu0 %v1025
        %v1064 = vpop.f32.mrf.mxu0
        %v1065 = vadd.f32 0.0, %v1064
        %v1066 = vpop.f32.mrf.mxu0
        %v1067 = vpop.f32.mrf.mxu0
        %v1068 = vpop.f32.mrf.mxu0
        %1069 = vdwg.mxu0
        %1070 = vrot.lane.b32.xlu0 %v538, 112
        %v1071 = vpop.permute.xlu0 %1070
        %1072 = vrot.lane.b32.xlu0 %v538, 80
        %v1073 = vpop.permute.xlu0 %1072
        %v1075 = vsel %vm542, %v1071, 0
        %v1078 = vsel %vm542, %v1073, 0
        %1080 = vmatprep.subr.bf16.mxu0 0
        %1081 = vmatpush1.bf16.xpose.msra.mxu0 0
        %1082 = vmatprep.subr.bf16.mxu0 0
        %1083 = vmatpush1.bf16.xpose.msra.mxu0 0
        %1084 = vmatprep.subr.bf16.mxu0 0
        %1085 = vmatpush1.bf16.xpose.msra.mxu0 0
        %1086 = vmatprep.subr.bf16.mxu0 0
        %1087 = vmatpush1.bf16.xpose.msra.mxu0 0
        %1088 = vmatprep.subr.bf16.mxu0 0
        %1089 = vmatpush1.bf16.xpose.msra.mxu0 0
        %1090 = vmatprep.subr.bf16.mxu0 0
        %1091 = vmatpush1.bf16.xpose.msra.mxu0 0
        %1092 = vmatprep.subr.bf16.mxu0 0
        %1093 = vmatpush1.bf16.xpose.msra.mxu0 0
        %1094 = vmatprep.subr.bf16.mxu0 0
        %1095 = vmatpush1.bf16.xpose.msra.mxu0 %v1078
        %1096 = vmatprep.subr.bf16.mxu0 0
        %1097 = vmatpush2.bf16.xpose.msra.mxu0 0
        %1098 = vmatprep.subr.bf16.mxu0 0
        %1099 = vmatpush2.bf16.xpose.msra.mxu0 0
        %1100 = vmatprep.subr.bf16.mxu0 0
        %1101 = vmatpush2.bf16.xpose.msra.mxu0 0
        %1102 = vmatprep.subr.bf16.mxu0 0
        %1103 = vmatpush2.bf16.xpose.msra.mxu0 0
        %1104 = vmatprep.subr.bf16.mxu0 0
        %1105 = vmatpush2.bf16.xpose.msra.mxu0 0
        %1106 = vmatprep.subr.bf16.mxu0 0
        %1107 = vmatpush2.bf16.xpose.msra.mxu0 0
        %1108 = vmatprep.subr.bf16.mxu0 0
        %1109 = vmatpush2.bf16.xpose.msra.mxu0 0
        %1110 = vmatprep.subr.bf16.mxu0 0
        %1111 = vmatpush2.bf16.xpose.msra.mxu0 0
        %1112 = vmatprep.mubr.bf16.mxu0 0
        %1113 = vmatmul.mubr.bf16.gmra.mxu0 %v1075
        %v1114 = vpop.f32.mrf.mxu0
        %v1115 = vadd.f32 0.0, %v1114
        %v1116 = vpop.f32.mrf.mxu0
        %v1117 = vpop.f32.mrf.mxu0
        %v1118 = vpop.f32.mrf.mxu0
        %1119 = vdwg.mxu0
        %v1120 = vmul.f32 %v1065, 0.35355338
        %v1121 = vmul.f32 %v1115, 0.35355338
        %v1122 = vadd.f32 %v1120, %v666
        %v1123 = vadd.f32 %v1121, %v670
        %v1124 = vsel %vm542, %v1122, -inf
        %1125 = vmax.xlane.f32.xlu0 %v1124
        %v1126 = vpop.xlane.xlu0 %1125
        %v1127 = vsel %vm542, %v1123, -inf
        %1128 = vmax.xlane.f32.xlu0 %v1127
        %v1129 = vpop.xlane.xlu0 %1128
        %v1130 = vsub.f32 %v1122, %v1126
        %v1131 = vsub.f32 %v1123, %v1129
        %v1132 = vmul.f32 %v1130, 1.442695
        %v1133 = vpow.pop %v1132
        %v1134 = vmul.f32 %v1131, 1.442695
        %v1135 = vpow.pop %v1134
        %v1136 = vsel %vm542, %v1133, 0.0
        %1137 = vadd.xlane.f32.xlu0 %v1136
        %v1138 = vpop.xlane.xlu0 %1137
        %v1139 = vsel %vm542, %v1135, 0.0
        %1140 = vadd.xlane.f32.xlu0 %v1139
        %v1141 = vpop.xlane.xlu0 %1140
        %v1142 = vrcp.pop %v1138
        %v1143 = vrcp.pop %v1141
        %v1144 = vmul.f32 %v1133, %v1142
        %v1145 = vmul.f32 %v1135, %v1143
        %v1146 = vpack.c.bf16 %v1144, %v1144
        %v1147 = vpack.c.bf16 %v1145, %v1145
        %1148 = vrot.lane.b32.xlu0 %v537, 48
        %v1149 = vpop.permute.xlu0 %1148
        %v1151 = vsel %vm542, %v1146, 0
        %v1154 = vsel %vm704, %v1149, 0
        %1156 = vmatprep.subr.bf16.mxu0 0
        %1157 = vmatpush1.bf16.msra.mxu0 0
        %1158 = vmatprep.subr.bf16.mxu0 0
        %1159 = vmatpush1.bf16.msra.mxu0 0
        %1160 = vmatprep.subr.bf16.mxu0 0
        %1161 = vmatpush1.bf16.msra.mxu0 0
        %1162 = vmatprep.subr.bf16.mxu0 0
        %1163 = vmatpush1.bf16.msra.mxu0 0
        %1164 = vmatprep.subr.bf16.mxu0 0
        %1165 = vmatpush1.bf16.msra.mxu0 0
        %1166 = vmatprep.subr.bf16.mxu0 0
        %1167 = vmatpush1.bf16.msra.mxu0 0
        %1168 = vmatprep.subr.bf16.mxu0 0
        %1169 = vmatpush1.bf16.msra.mxu0 0
        %1170 = vmatprep.subr.bf16.mxu0 0
        %1171 = vmatpush1.bf16.msra.mxu0 %v1154
        %1172 = vmatprep.subr.bf16.mxu0 0
        %1173 = vmatpush2.bf16.msra.mxu0 0
        %1174 = vmatprep.subr.bf16.mxu0 0
        %1175 = vmatpush2.bf16.msra.mxu0 0
        %1176 = vmatprep.subr.bf16.mxu0 0
        %1177 = vmatpush2.bf16.msra.mxu0 0
        %1178 = vmatprep.subr.bf16.mxu0 0
        %1179 = vmatpush2.bf16.msra.mxu0 0
        %1180 = vmatprep.subr.bf16.mxu0 0
        %1181 = vmatpush2.bf16.msra.mxu0 0
        %1182 = vmatprep.subr.bf16.mxu0 0
        %1183 = vmatpush2.bf16.msra.mxu0 0
        %1184 = vmatprep.subr.bf16.mxu0 0
        %1185 = vmatpush2.bf16.msra.mxu0 0
        %1186 = vmatprep.subr.bf16.mxu0 0
        %1187 = vmatpush2.bf16.msra.mxu0 0
        %1188 = vmatprep.mubr.bf16.mxu0 0
        %1189 = vmatmul.mubr.bf16.gmra.mxu0 %v1151
        %v1190 = vpop.f32.mrf.mxu0
        %v1191 = vadd.f32 0.0, %v1190
        %v1192 = vpop.f32.mrf.mxu0
        %v1193 = vpop.f32.mrf.mxu0
        %v1194 = vpop.f32.mrf.mxu0
        %1195 = vdwg.mxu0
        %1196 = vrot.lane.b32.xlu0 %v538, 48
        %v1197 = vpop.permute.xlu0 %1196
        %v1199 = vsel %vm542, %v1147, 0
        %v1202 = vsel %vm704, %v1197, 0
        %1204 = vmatprep.subr.bf16.mxu0 0
        %1205 = vmatpush1.bf16.msra.mxu0 0
        %1206 = vmatprep.subr.bf16.mxu0 0
        %1207 = vmatpush1.bf16.msra.mxu0 0
        %1208 = vmatprep.subr.bf16.mxu0 0
        %1209 = vmatpush1.bf16.msra.mxu0 0
        %1210 = vmatprep.subr.bf16.mxu0 0
        %1211 = vmatpush1.bf16.msra.mxu0 0
        %1212 = vmatprep.subr.bf16.mxu0 0
        %1213 = vmatpush1.bf16.msra.mxu0 0
        %1214 = vmatprep.subr.bf16.mxu0 0
        %1215 = vmatpush1.bf16.msra.mxu0 0
        %1216 = vmatprep.subr.bf16.mxu0 0
        %1217 = vmatpush1.bf16.msra.mxu0 0
        %1218 = vmatprep.subr.bf16.mxu0 0
        %1219 = vmatpush1.bf16.msra.mxu0 %v1202
        %1220 = vmatprep.subr.bf16.mxu0 0
        %1221 = vmatpush2.bf16.msra.mxu0 0
        %1222 = vmatprep.subr.bf16.mxu0 0
        %1223 = vmatpush2.bf16.msra.mxu0 0
        %1224 = vmatprep.subr.bf16.mxu0 0
        %1225 = vmatpush2.bf16.msra.mxu0 0
        %1226 = vmatprep.subr.bf16.mxu0 0
        %1227 = vmatpush2.bf16.msra.mxu0 0
        %1228 = vmatprep.subr.bf16.mxu0 0
        %1229 = vmatpush2.bf16.msra.mxu0 0
        %1230 = vmatprep.subr.bf16.mxu0 0
        %1231 = vmatpush2.bf16.msra.mxu0 0
        %1232 = vmatprep.subr.bf16.mxu0 0
        %1233 = vmatpush2.bf16.msra.mxu0 0
        %1234 = vmatprep.subr.bf16.mxu0 0
        %1235 = vmatpush2.bf16.msra.mxu0 0
        %1236 = vmatprep.mubr.bf16.mxu0 0
        %1237 = vmatmul.mubr.bf16.gmra.mxu0 %v1199
        %v1238 = vpop.f32.mrf.mxu0
        %v1239 = vadd.f32 0.0, %v1238
        %v1240 = vpop.f32.mrf.mxu0
        %v1241 = vpop.f32.mrf.mxu0
        %v1242 = vpop.f32.mrf.mxu0
        %1243 = vdwg.mxu0
        %1244 = vrot.lane.b32.xlu0 %v537, 104
        %v1245 = vpop.permute.xlu0 %1244
        %1246 = vrot.lane.b32.xlu0 %v537, 72
        %v1247 = vpop.permute.xlu0 %1246
        %v1249 = vsel %vm542, %v1245, 0
        %v1252 = vsel %vm542, %v1247, 0
        %1254 = vmatprep.subr.bf16.mxu0 0
        %1255 = vmatpush1.bf16.xpose.msra.mxu0 0
        %1256 = vmatprep.subr.bf16.mxu0 0
        %1257 = vmatpush1.bf16.xpose.msra.mxu0 0
        %1258 = vmatprep.subr.bf16.mxu0 0
        %1259 = vmatpush1.bf16.xpose.msra.mxu0 0
        %1260 = vmatprep.subr.bf16.mxu0 0
        %1261 = vmatpush1.bf16.xpose.msra.mxu0 0
        %1262 = vmatprep.subr.bf16.mxu0 0
        %1263 = vmatpush1.bf16.xpose.msra.mxu0 0
        %1264 = vmatprep.subr.bf16.mxu0 0
        %1265 = vmatpush1.bf16.xpose.msra.mxu0 0
        %1266 = vmatprep.subr.bf16.mxu0 0
        %1267 = vmatpush1.bf16.xpose.msra.mxu0 0
        %1268 = vmatprep.subr.bf16.mxu0 0
        %1269 = vmatpush1.bf16.xpose.msra.mxu0 %v1252
        %1270 = vmatprep.subr.bf16.mxu0 0
        %1271 = vmatpush2.bf16.xpose.msra.mxu0 0
        %1272 = vmatprep.subr.bf16.mxu0 0
        %1273 = vmatpush2.bf16.xpose.msra.mxu0 0
        %1274 = vmatprep.subr.bf16.mxu0 0
        %1275 = vmatpush2.bf16.xpose.msra.mxu0 0
        %1276 = vmatprep.subr.bf16.mxu0 0
        %1277 = vmatpush2.bf16.xpose.msra.mxu0 0
        %1278 = vmatprep.subr.bf16.mxu0 0
        %1279 = vmatpush2.bf16.xpose.msra.mxu0 0
        %1280 = vmatprep.subr.bf16.mxu0 0
        %1281 = vmatpush2.bf16.xpose.msra.mxu0 0
        %1282 = vmatprep.subr.bf16.mxu0 0
        %1283 = vmatpush2.bf16.xpose.msra.mxu0 0
        %1284 = vmatprep.subr.bf16.mxu0 0
        %1285 = vmatpush2.bf16.xpose.msra.mxu0 0
        %1286 = vmatprep.mubr.bf16.mxu0 0
        %1287 = vmatmul.mubr.bf16.gmra.mxu0 %v1249
        %v1288 = vpop.f32.mrf.mxu0
        %v1289 = vadd.f32 0.0, %v1288
        %v1290 = vpop.f32.mrf.mxu0
        %v1291 = vpop.f32.mrf.mxu0
        %v1292 = vpop.f32.mrf.mxu0
        %1293 = vdwg.mxu0
        %1294 = vrot.lane.b32.xlu0 %v538, 104
        %v1295 = vpop.permute.xlu0 %1294
        %1296 = vrot.lane.b32.xlu0 %v538, 72
        %v1297 = vpop.permute.xlu0 %1296
        %v1299 = vsel %vm542, %v1295, 0
        %v1302 = vsel %vm542, %v1297, 0
        %1304 = vmatprep.subr.bf16.mxu0 0
        %1305 = vmatpush1.bf16.xpose.msra.mxu0 0
        %1306 = vmatprep.subr.bf16.mxu0 0
        %1307 = vmatpush1.bf16.xpose.msra.mxu0 0
        %1308 = vmatprep.subr.bf16.mxu0 0
        %1309 = vmatpush1.bf16.xpose.msra.mxu0 0
        %1310 = vmatprep.subr.bf16.mxu0 0
        %1311 = vmatpush1.bf16.xpose.msra.mxu0 0
        %1312 = vmatprep.subr.bf16.mxu0 0
        %1313 = vmatpush1.bf16.xpose.msra.mxu0 0
        %1314 = vmatprep.subr.bf16.mxu0 0
        %1315 = vmatpush1.bf16.xpose.msra.mxu0 0
        %1316 = vmatprep.subr.bf16.mxu0 0
        %1317 = vmatpush1.bf16.xpose.msra.mxu0 0
        %1318 = vmatprep.subr.bf16.mxu0 0
        %1319 = vmatpush1.bf16.xpose.msra.mxu0 %v1302
        %1320 = vmatprep.subr.bf16.mxu0 0
        %1321 = vmatpush2.bf16.xpose.msra.mxu0 0
        %1322 = vmatprep.subr.bf16.mxu0 0
        %1323 = vmatpush2.bf16.xpose.msra.mxu0 0
        %1324 = vmatprep.subr.bf16.mxu0 0
        %1325 = vmatpush2.bf16.xpose.msra.mxu0 0
        %1326 = vmatprep.subr.bf16.mxu0 0
        %1327 = vmatpush2.bf16.xpose.msra.mxu0 0
        %1328 = vmatprep.subr.bf16.mxu0 0
        %1329 = vmatpush2.bf16.xpose.msra.mxu0 0
        %1330 = vmatprep.subr.bf16.mxu0 0
        %1331 = vmatpush2.bf16.xpose.msra.mxu0 0
        %1332 = vmatprep.subr.bf16.mxu0 0
        %1333 = vmatpush2.bf16.xpose.msra.mxu0 0
        %1334 = vmatprep.subr.bf16.mxu0 0
        %1335 = vmatpush2.bf16.xpose.msra.mxu0 0
        %1336 = vmatprep.mubr.bf16.mxu0 0
        %1337 = vmatmul.mubr.bf16.gmra.mxu0 %v1299
        %v1338 = vpop.f32.mrf.mxu0
        %v1339 = vadd.f32 0.0, %v1338
        %v1340 = vpop.f32.mrf.mxu0
        %v1341 = vpop.f32.mrf.mxu0
        %v1342 = vpop.f32.mrf.mxu0
        %1343 = vdwg.mxu0
        %v1344 = vmul.f32 %v1289, 0.35355338
        %v1345 = vmul.f32 %v1339, 0.35355338
        %v1346 = vadd.f32 %v1344, %v666
        %v1347 = vadd.f32 %v1345, %v670
        %v1348 = vsel %vm542, %v1346, -inf
        %1349 = vmax.xlane.f32.xlu0 %v1348
        %v1350 = vpop.xlane.xlu0 %1349
        %v1351 = vsel %vm542, %v1347, -inf
        %1352 = vmax.xlane.f32.xlu0 %v1351
        %v1353 = vpop.xlane.xlu0 %1352
        %v1354 = vsub.f32 %v1346, %v1350
        %v1355 = vsub.f32 %v1347, %v1353
        %v1356 = vmul.f32 %v1354, 1.442695
        %v1357 = vpow.pop %v1356
        %v1358 = vmul.f32 %v1355, 1.442695
        %v1359 = vpow.pop %v1358
        %v1360 = vsel %vm542, %v1357, 0.0
        %1361 = vadd.xlane.f32.xlu0 %v1360
        %v1362 = vpop.xlane.xlu0 %1361
        %v1363 = vsel %vm542, %v1359, 0.0
        %1364 = vadd.xlane.f32.xlu0 %v1363
        %v1365 = vpop.xlane.xlu0 %1364
        %v1366 = vrcp.pop %v1362
        %v1367 = vrcp.pop %v1365
        %v1368 = vmul.f32 %v1357, %v1366
        %v1369 = vmul.f32 %v1359, %v1367
        %v1370 = vpack.c.bf16 %v1368, %v1368
        %v1371 = vpack.c.bf16 %v1369, %v1369
        %1372 = vrot.lane.b32.xlu0 %v537, 40
        %v1373 = vpop.permute.xlu0 %1372
        %v1375 = vsel %vm542, %v1370, 0
        %v1378 = vsel %vm704, %v1373, 0
        %1380 = vmatprep.subr.bf16.mxu0 0
        %1381 = vmatpush1.bf16.msra.mxu0 0
        %1382 = vmatprep.subr.bf16.mxu0 0
        %1383 = vmatpush1.bf16.msra.mxu0 0
        %1384 = vmatprep.subr.bf16.mxu0 0
        %1385 = vmatpush1.bf16.msra.mxu0 0
        %1386 = vmatprep.subr.bf16.mxu0 0
        %1387 = vmatpush1.bf16.msra.mxu0 0
        %1388 = vmatprep.subr.bf16.mxu0 0
        %1389 = vmatpush1.bf16.msra.mxu0 0
        %1390 = vmatprep.subr.bf16.mxu0 0
        %1391 = vmatpush1.bf16.msra.mxu0 0
        %1392 = vmatprep.subr.bf16.mxu0 0
        %1393 = vmatpush1.bf16.msra.mxu0 0
        %1394 = vmatprep.subr.bf16.mxu0 0
        %1395 = vmatpush1.bf16.msra.mxu0 %v1378
        %1396 = vmatprep.subr.bf16.mxu0 0
        %1397 = vmatpush2.bf16.msra.mxu0 0
        %1398 = vmatprep.subr.bf16.mxu0 0
        %1399 = vmatpush2.bf16.msra.mxu0 0
        %1400 = vmatprep.subr.bf16.mxu0 0
        %1401 = vmatpush2.bf16.msra.mxu0 0
        %1402 = vmatprep.subr.bf16.mxu0 0
        %1403 = vmatpush2.bf16.msra.mxu0 0
        %1404 = vmatprep.subr.bf16.mxu0 0
        %1405 = vmatpush2.bf16.msra.mxu0 0
        %1406 = vmatprep.subr.bf16.mxu0 0
        %1407 = vmatpush2.bf16.msra.mxu0 0
        %1408 = vmatprep.subr.bf16.mxu0 0
        %1409 = vmatpush2.bf16.msra.mxu0 0
        %1410 = vmatprep.subr.bf16.mxu0 0
        %1411 = vmatpush2.bf16.msra.mxu0 0
        %1412 = vmatprep.mubr.bf16.mxu0 0
        %1413 = vmatmul.mubr.bf16.gmra.mxu0 %v1375
        %v1414 = vpop.f32.mrf.mxu0
        %v1415 = vadd.f32 0.0, %v1414
        %v1416 = vpop.f32.mrf.mxu0
        %v1417 = vpop.f32.mrf.mxu0
        %v1418 = vpop.f32.mrf.mxu0
        %1419 = vdwg.mxu0
        %1420 = vrot.lane.b32.xlu0 %v538, 40
        %v1421 = vpop.permute.xlu0 %1420
        %v1423 = vsel %vm542, %v1371, 0
        %v1426 = vsel %vm704, %v1421, 0
        %1428 = vmatprep.subr.bf16.mxu0 0
        %1429 = vmatpush1.bf16.msra.mxu0 0
        %1430 = vmatprep.subr.bf16.mxu0 0
        %1431 = vmatpush1.bf16.msra.mxu0 0
        %1432 = vmatprep.subr.bf16.mxu0 0
        %1433 = vmatpush1.bf16.msra.mxu0 0
        %1434 = vmatprep.subr.bf16.mxu0 0
        %1435 = vmatpush1.bf16.msra.mxu0 0
        %1436 = vmatprep.subr.bf16.mxu0 0
        %1437 = vmatpush1.bf16.msra.mxu0 0
        %1438 = vmatprep.subr.bf16.mxu0 0
        %1439 = vmatpush1.bf16.msra.mxu0 0
        %1440 = vmatprep.subr.bf16.mxu0 0
        %1441 = vmatpush1.bf16.msra.mxu0 0
        %1442 = vmatprep.subr.bf16.mxu0 0
        %1443 = vmatpush1.bf16.msra.mxu0 %v1426
        %1444 = vmatprep.subr.bf16.mxu0 0
        %1445 = vmatpush2.bf16.msra.mxu0 0
        %1446 = vmatprep.subr.bf16.mxu0 0
        %1447 = vmatpush2.bf16.msra.mxu0 0
        %1448 = vmatprep.subr.bf16.mxu0 0
        %1449 = vmatpush2.bf16.msra.mxu0 0
        %1450 = vmatprep.subr.bf16.mxu0 0
        %1451 = vmatpush2.bf16.msra.mxu0 0
        %1452 = vmatprep.subr.bf16.mxu0 0
        %1453 = vmatpush2.bf16.msra.mxu0 0
        %1454 = vmatprep.subr.bf16.mxu0 0
        %1455 = vmatpush2.bf16.msra.mxu0 0
        %1456 = vmatprep.subr.bf16.mxu0 0
        %1457 = vmatpush2.bf16.msra.mxu0 0
        %1458 = vmatprep.subr.bf16.mxu0 0
        %1459 = vmatpush2.bf16.msra.mxu0 0
        %1460 = vmatprep.mubr.bf16.mxu0 0
        %1461 = vmatmul.mubr.bf16.gmra.mxu0 %v1423
        %v1462 = vpop.f32.mrf.mxu0
        %v1463 = vadd.f32 0.0, %v1462
        %v1464 = vpop.f32.mrf.mxu0
        %v1465 = vpop.f32.mrf.mxu0
        %v1466 = vpop.f32.mrf.mxu0
        %1467 = vdwg.mxu0
        %1470 = vrot.lane.b32.xlu0 %v967, 8
        %v1471 = vpop.permute.xlu0 %1470
        %1472 = vrot.lane.b32.xlu0 %v1015, 8
        %v1473 = vpop.permute.xlu0 %1472
        %1478 = vrot.lane.b32.xlu0 %v1191, 16
        %v1479 = vpop.permute.xlu0 %1478
        %1480 = vrot.lane.b32.xlu0 %v1239, 16
        %v1481 = vpop.permute.xlu0 %1480
        %1486 = vrot.lane.b32.xlu0 %v1415, 24
        %v1487 = vpop.permute.xlu0 %1486
        %1488 = vrot.lane.b32.xlu0 %v1463, 24
        %v1489 = vpop.permute.xlu0 %1488
        %v1492 = vsel %vm542, %v743, %v1471
        %v1493 = vsel %vm542, %v791, %v1473
        %vm1494 = vcmask 130048
        %v1495 = vsel %vm1494, %v1492, %v1479
        %v1496 = vsel %vm1494, %v1493, %v1481
        %vm1497 = vcmask 195584
        %v1498 = vsel %vm1497, %v1495, %v1487
        %v1499 = vsel %vm1497, %v1496, %v1489
        %v1500 = vpack.c.bf16 %v1499, %v1498
        %v1501 = vld [vmem:[%s424] sm:$0xf]
        %v1502 = vld [vmem:[%s424 + $0x4] sm:$0xf]
        %v1503 = vld [vmem:[%s424 + $0x8] sm:$0xf]
        %v1504 = vld [vmem:[%s424 + $0xc] sm:$0xf]
        %v1509 = vunpack.c.l.b16 %v1501
        %v1510 = vunpack.c.l.b16 %v1502
        %v1511 = vunpack.c.l.b16 %v1503
        %v1512 = vunpack.c.l.b16 %v1504
        %v1513 = vpack.c.b16 %v1510, %v1509
        %v1514 = vpack.c.b16 %v1512, %v1511
        %v1518 = vsel %vm451, %v1500, 0
        %1520 = vmatprep.subr.bf16.mxu0 0
        %1521 = vmatpush1.bf16.msra.mxu0 0
        %1522 = vmatprep.subr.bf16.mxu0 0
        %1523 = vmatpush1.bf16.msra.mxu0 0
        %1524 = vmatprep.subr.bf16.mxu0 0
        %1525 = vmatpush1.bf16.msra.mxu0 0
        %1526 = vmatprep.subr.bf16.mxu0 0
        %1527 = vmatpush1.bf16.msra.mxu0 0
        %1528 = vmatprep.subr.bf16.mxu0 0
        %1529 = vmatpush1.bf16.msra.mxu0 0
        %1530 = vmatprep.subr.bf16.mxu0 0
        %1531 = vmatpush1.bf16.msra.mxu0 0
        %1532 = vmatprep.subr.bf16.mxu0 0
        %1533 = vmatpush1.bf16.msra.mxu0 %v1514
        %1534 = vmatprep.subr.bf16.mxu0 0
        %1535 = vmatpush1.bf16.msra.mxu0 %v1513
        %1536 = vmatprep.subr.bf16.mxu0 0
        %1537 = vmatpush2.bf16.msra.mxu0 0
        %1538 = vmatprep.subr.bf16.mxu0 0
        %1539 = vmatpush2.bf16.msra.mxu0 0
        %1540 = vmatprep.subr.bf16.mxu0 0
        %1541 = vmatpush2.bf16.msra.mxu0 0
        %1542 = vmatprep.subr.bf16.mxu0 0
        %1543 = vmatpush2.bf16.msra.mxu0 0
        %1544 = vmatprep.subr.bf16.mxu0 0
        %1545 = vmatpush2.bf16.msra.mxu0 0
        %1546 = vmatprep.subr.bf16.mxu0 0
        %1547 = vmatpush2.bf16.msra.mxu0 0
        %1548 = vmatprep.subr.bf16.mxu0 0
        %1549 = vmatpush2.bf16.msra.mxu0 0
        %1550 = vmatprep.subr.bf16.mxu0 0
        %1551 = vmatpush2.bf16.msra.mxu0 0
        %1552 = vmatprep.mubr.bf16.mxu0 0
        %1553 = vmatmul.mubr.bf16.gmra.mxu0 %v1518
        %v1554 = vpop.f32.mrf.mxu0
        %v1555 = vadd.f32 0.0, %v1554
        %v1556 = vpop.f32.mrf.mxu0
        %v1557 = vpop.f32.mrf.mxu0
        %v1558 = vadd.f32 0.0, %v1557
        %v1559 = vpop.f32.mrf.mxu0
        %1560 = vdwg.mxu0
        %v1561 = vadd.f32 %v445, %v1555
        %v1562 = vadd.f32 %v446, %v1558
        %v1563 = vld [vmem:[%s414] sm:$0x1]
        %v1564 = vmul.f32 %v1561, %v1561
        %v1565 = vmul.f32 %v1562, %v1562
        %v1566 = vsel %vm451, %v1564, 0.0
        %1567 = vadd.xlane.f32.xlu0 %v1566
        %v1568 = vpop.xlane.xlu0 %1567
        %v1569 = vsel %vm451, %v1565, 0.0
        %1570 = vadd.xlane.f32.xlu0 %v1569
        %v1571 = vpop.xlane.xlu0 %1570
        %v1572 = vmul.f32 %v1568, %v458
        %v1573 = vmul.f32 %v1571, %v458
        %v1574 = vadd.f32 %v1572, 1e-06
        %v1575 = vadd.f32 %v1573, 1e-06
        %v1576 = vrsqrt.pop %v1574
        %v1577 = vrsqrt.pop %v1575
        %v1578 = vmul.f32 %v1561, %v1576
        %v1579 = vmul.f32 %v1562, %v1577
        %v1580 = vadd.f32 %v1563, 1.0
        %v1582 = vlaneseq
        %v1583 = vshrl.u32 %v1582, 7
        %v1584 = vsub.s32 0, %v1583
        %v1585 = vrot.slane %v1580, %v1584
        %v1587 = vmul.f32 %v1578, %v1585
        %v1588 = vmul.f32 %v1579, %v1585
        %v1589 = vpack.c.bf16 %v1588, %v1587
        %v1590 = vld [vmem:[%s429] sm:$0xf]
        %v1591 = vld [vmem:[%s429 + $0x4] sm:$0xf]
        %v1592 = vld [vmem:[%s429 + $0x8] sm:$0xf]
        %v1593 = vld [vmem:[%s429 + $0xc] sm:$0xf]
        %v1598 = vunpack.c.l.b16 %v1590
        %v1599 = vunpack.c.l.b16 %v1591
        %v1600 = vunpack.c.l.b16 %v1592
        %v1601 = vunpack.c.l.b16 %v1593
        %v1602 = vpack.c.b16 %v1599, %v1598
        %v1603 = vpack.c.b16 %v1601, %v1600
        %v1607 = vsel %vm451, %v1589, 0
        %1609 = vmatprep.subr.bf16.mxu0 0
        %1610 = vmatpush1.bf16.msra.mxu0 0
        %1611 = vmatprep.subr.bf16.mxu0 0
        %1612 = vmatpush1.bf16.msra.mxu0 0
        %1613 = vmatprep.subr.bf16.mxu0 0
        %1614 = vmatpush1.bf16.msra.mxu0 0
        %1615 = vmatprep.subr.bf16.mxu0 0
        %1616 = vmatpush1.bf16.msra.mxu0 0
        %1617 = vmatprep.subr.bf16.mxu0 0
        %1618 = vmatpush1.bf16.msra.mxu0 0
        %1619 = vmatprep.subr.bf16.mxu0 0
        %1620 = vmatpush1.bf16.msra.mxu0 0
        %1621 = vmatprep.subr.bf16.mxu0 0
        %1622 = vmatpush1.bf16.msra.mxu0 %v1603
        %1623 = vmatprep.subr.bf16.mxu0 0
        %1624 = vmatpush1.bf16.msra.mxu0 %v1602
        %1625 = vmatprep.subr.bf16.mxu0 0
        %1626 = vmatpush2.bf16.msra.mxu0 0
        %1627 = vmatprep.subr.bf16.mxu0 0
        %1628 = vmatpush2.bf16.msra.mxu0 0
        %1629 = vmatprep.subr.bf16.mxu0 0
        %1630 = vmatpush2.bf16.msra.mxu0 0
        %1631 = vmatprep.subr.bf16.mxu0 0
        %1632 = vmatpush2.bf16.msra.mxu0 0
        %1633 = vmatprep.subr.bf16.mxu0 0
        %1634 = vmatpush2.bf16.msra.mxu0 0
        %1635 = vmatprep.subr.bf16.mxu0 0
        %1636 = vmatpush2.bf16.msra.mxu0 0
        %1637 = vmatprep.subr.bf16.mxu0 0
        %1638 = vmatpush2.bf16.msra.mxu0 0
        %1639 = vmatprep.subr.bf16.mxu0 0
        %1640 = vmatpush2.bf16.msra.mxu0 0
        %1641 = vmatprep.mubr.bf16.mxu0 0
        %1642 = vmatmul.mubr.bf16.gmra.mxu0 %v1607
        %v1643 = vpop.f32.mrf.mxu0
        %v1644 = vadd.f32 0.0, %v1643
        %v1645 = vpop.f32.mrf.mxu0
        %v1646 = vpop.f32.mrf.mxu0
        %v1647 = vadd.f32 0.0, %v1646
        %v1648 = vpop.f32.mrf.mxu0
        %1649 = vdwg.mxu0
        %v1650 = vmul.f32 %v1644, %v1644
        %v1651 = vmul.f32 %v1647, %v1647
        %v1652 = vmul.f32 %v1644, %v1650
        %v1653 = vmul.f32 %v1647, %v1651
        %v1654 = vmul.f32 %v1652, 0.044715
        %v1655 = vmul.f32 %v1653, 0.044715
        %v1656 = vadd.f32 %v1644, %v1654
        %v1657 = vadd.f32 %v1647, %v1655
        %v1658 = vmul.f32 %v1656, 0.7978846
        %v1659 = vmul.f32 %v1657, 0.7978846
        %v1660 = vtanh.pop %v1658
        %v1661 = vtanh.pop %v1659
        %v1662 = vadd.f32 %v1660, 1.0
        %v1663 = vadd.f32 %v1661, 1.0
        %v1664 = vmul.f32 %v1662, 0.5
        %v1665 = vmul.f32 %v1663, 0.5
        %v1666 = vmul.f32 %v1644, %v1664
        %v1667 = vmul.f32 %v1647, %v1665
        %1670 = vrot.lane.b32.xlu0 %v1644, 64
        %v1671 = vpop.permute.xlu0 %1670
        %1672 = vrot.lane.b32.xlu0 %v1647, 64
        %v1673 = vpop.permute.xlu0 %1672
        %v1676 = vmul.f32 %v1666, %v1671
        %v1677 = vmul.f32 %v1667, %v1673
        %v1678 = vpack.c.bf16 %v1677, %v1676
        %v1679 = vld [vmem:[%s434] sm:$0xf]
        %v1680 = vld [vmem:[%s434 + $0x4] sm:$0xf]
        %v1681 = vld [vmem:[%s434 + $0x8] sm:$0xf]
        %v1682 = vld [vmem:[%s434 + $0xc] sm:$0xf]
        %v1683 = vld [vmem:[%s434 + $0x10] sm:$0xf]
        %v1684 = vld [vmem:[%s434 + $0x14] sm:$0xf]
        %v1685 = vld [vmem:[%s434 + $0x18] sm:$0xf]
        %v1686 = vld [vmem:[%s434 + $0x1c] sm:$0xf]
        %v1695 = vunpack.c.l.b16 %v1679
        %v1696 = vunpack.c.l.b16 %v1680
        %v1697 = vunpack.c.l.b16 %v1681
        %v1698 = vunpack.c.l.b16 %v1682
        %v1699 = vunpack.c.l.b16 %v1683
        %v1700 = vunpack.c.l.b16 %v1684
        %v1701 = vunpack.c.l.b16 %v1685
        %v1702 = vunpack.c.l.b16 %v1686
        %v1703 = vpack.c.b16 %v1696, %v1695
        %v1704 = vpack.c.b16 %v1698, %v1697
        %v1705 = vpack.c.b16 %v1700, %v1699
        %v1706 = vpack.c.b16 %v1702, %v1701
        %vm1711 = vcmask 523264
        %v1713 = vsel %vm1711, %v1678, 0
        %1715 = vmatprep.subr.bf16.mxu0 0
        %1716 = vmatpush1.bf16.msra.mxu0 0
        %1717 = vmatprep.subr.bf16.mxu0 0
        %1718 = vmatpush1.bf16.msra.mxu0 0
        %1719 = vmatprep.subr.bf16.mxu0 0
        %1720 = vmatpush1.bf16.msra.mxu0 0
        %1721 = vmatprep.subr.bf16.mxu0 0
        %1722 = vmatpush1.bf16.msra.mxu0 0
        %1723 = vmatprep.subr.bf16.mxu0 0
        %1724 = vmatpush1.bf16.msra.mxu0 %v1706
        %1725 = vmatprep.subr.bf16.mxu0 0
        %1726 = vmatpush1.bf16.msra.mxu0 %v1705
        %1727 = vmatprep.subr.bf16.mxu0 0
        %1728 = vmatpush1.bf16.msra.mxu0 %v1704
        %1729 = vmatprep.subr.bf16.mxu0 0
        %1730 = vmatpush1.bf16.msra.mxu0 %v1703
        %1731 = vmatprep.subr.bf16.mxu0 0
        %1732 = vmatpush2.bf16.msra.mxu0 0
        %1733 = vmatprep.subr.bf16.mxu0 0
        %1734 = vmatpush2.bf16.msra.mxu0 0
        %1735 = vmatprep.subr.bf16.mxu0 0
        %1736 = vmatpush2.bf16.msra.mxu0 0
        %1737 = vmatprep.subr.bf16.mxu0 0
        %1738 = vmatpush2.bf16.msra.mxu0 0
        %1739 = vmatprep.subr.bf16.mxu0 0
        %1740 = vmatpush2.bf16.msra.mxu0 0
        %1741 = vmatprep.subr.bf16.mxu0 0
        %1742 = vmatpush2.bf16.msra.mxu0 0
        %1743 = vmatprep.subr.bf16.mxu0 0
        %1744 = vmatpush2.bf16.msra.mxu0 0
        %1745 = vmatprep.subr.bf16.mxu0 0
        %1746 = vmatpush2.bf16.msra.mxu0 0
        %1747 = vmatprep.mubr.bf16.mxu0 0
        %1748 = vmatmul.mubr.bf16.gmra.mxu0 %v1713
        %v1749 = vpop.f32.mrf.mxu0
        %v1750 = vadd.f32 0.0, %v1749
        %v1751 = vpop.f32.mrf.mxu0
        %v1752 = vpop.f32.mrf.mxu0
        %v1753 = vadd.f32 0.0, %v1752
        %v1754 = vpop.f32.mrf.mxu0
        %1755 = vdwg.mxu0
        %v1756 = vadd.f32 %v1561, %v1750
        %v1757 = vadd.f32 %v1562, %v1753
        %1758 = vst.msk [vmem:[#allocation7] sm:$0xff] %vm451, %v1756
        %1759 = vst.msk [vmem:[#allocation7 + $0x8] sm:$0xff] %vm451, %v1757
        %p1760 = scmp.eq.s32.totalorder %s23, 1
        // Predicated region
        $region69: #{tpu_custom_call.1} parent=55 // pred_check
          %p1761 = pneg %p1760
        $region70: #{tpu_custom_call.1} parent=55 // pred_check_branch
          %1763 = sbr.rel (%p1761) target = $region72
        $region71: #{tpu_custom_call.1} parent=55 // pred_region
          %v1764 = vld [vmem:[#allocation7] sm:$0xff]
          %v1765 = vld [vmem:[#allocation7 + $0x8] sm:$0xff]
          %v1766 = vld [vmem:[%s8] sm:$0x1]
          %v1767 = vmul.f32 %v1764, %v1764
          %v1768 = vmul.f32 %v1765, %v1765
          %v1769 = vsel %vm451, %v1767, 0.0
          %1770 = vadd.xlane.f32.xlu0 %v1769
          %v1771 = vpop.xlane.xlu0 %1770
          %v1772 = vsel %vm451, %v1768, 0.0
          %1773 = vadd.xlane.f32.xlu0 %v1772
          %v1774 = vpop.xlane.xlu0 %1773
          %v1775 = vmul.f32 %v1771, %v458
          %v1776 = vmul.f32 %v1774, %v458
          %v1777 = vadd.f32 %v1775, 1e-06
          %v1778 = vadd.f32 %v1776, 1e-06
          %v1779 = vrsqrt.pop %v1777
          %v1780 = vrsqrt.pop %v1778
          %v1781 = vmul.f32 %v1764, %v1779
          %v1782 = vmul.f32 %v1765, %v1780
          %v1783 = vadd.f32 %v1766, 1.0
          %v1785 = vlaneseq
          %v1786 = vshrl.u32 %v1785, 7
          %v1787 = vsub.s32 0, %v1786
          %v1788 = vrot.slane %v1783, %v1787
          %v1790 = vmul.f32 %v1781, %v1788
          %v1791 = vmul.f32 %v1782, %v1788
          %1792 = vst.msk [vmem:[#allocation7] sm:$0xff] %vm451, %v1790
          %1793 = vst.msk [vmem:[#allocation7 + $0x8] sm:$0xff] %vm451, %v1791
        $region72: #{tpu_custom_call.1} parent=55 // pred_fallthru
          _
        // Predicated region
        $region73: #{tpu_custom_call.1} parent=55 // pred_check
          %p1794 = pneg %p255
        $region74: #{tpu_custom_call.1} parent=55 // pred_check_branch
          %1796 = sbr.rel (%p1794) target = $region76
        $region75: #{tpu_custom_call.1} parent=55 // pred_region
          %s1798 = ssub.s32 256, 256
          %1799 = vsyncadd [#allocation4], %s1798
          %s1800 = sshll.u32 [#allocation7], 4
          %s1801 = int_to_ptr.vmem [resolvable:$true] %s1800
          %1806 = dma.vmem_to_hbm [thread:$0]  %s1801, 256, %s9, [#allocation4], 128, 128, 8
        $region76: #{tpu_custom_call.1} parent=55 // pred_fallthru
          _
        // Predicated region
        $region77: #{tpu_custom_call.1} parent=55 // pred_check
          %p1807 = pneg %p255
        $region78: #{tpu_custom_call.1} parent=55 // pred_check_branch
          %1809 = sbr.rel (%p1807) target = $region80
        $region79: #{tpu_custom_call.1} parent=55 // pred_region
          %1810 = dma.done [#allocation4], 256
        $region80: #{tpu_custom_call.1} parent=55 // pred_fallthru
          _
      $region56: #{tpu_custom_call.1} parent=5 // pred_fallthru
        _
      %p1811 = scmp.le.s32.totalorder 2, %s18
      // Predicated region
      $region81: #{tpu_custom_call.1} parent=5 // pred_check
        %p1812 = pneg %p1811
      $region82: #{tpu_custom_call.1} parent=5 // pred_check_branch
        %1814 = sbr.rel (%p1812) target = $region84
      $region83: #{tpu_custom_call.1} parent=5 // pred_region
        %s1815 = ssub.s32 %s18, 2
      $region84: #{tpu_custom_call.1} parent=5 // pred_fallthru
        _
    $region6: #{tpu_custom_call.1} parent=1 // loop_footer
      %s22 = sadd.s32 1, %s18
    $region7: #{tpu_custom_call.1} parent=1 // loop_footer_branch
      %17 = sbr.rel target = $region3
    $region8: #{tpu_custom_call.1} parent=1 // loop_exit
      _
    %1816 = vsyncpa [#allocation3], 1
    %s1817 = scalar_lea.sflag [#allocation3], 1
    %1818 = vsyncpa %s1817, 1
    %1819 = vsyncpa [#allocation6], 1
    %1820 = vsyncpa [#allocation4], 1
    %s1821 = scalar_lea.sflag [#allocation4], 1
    %1822 = vsyncpa %s1821, 1

</llo_original>
